<compile_context>
chip_gen: v7x
topology: tpu7x:2x2x1
jax: 0.10.0
libtpu: 0.0.40
codegen_flags: <defaults>
</compile_context>

<pallas_src>
import functools
import math

import jax
import jax.numpy as jnp
from jax.experimental import pallas as pl
from jax.experimental.pallas import tpu as pltpu


# ---------------------------------------------------------------------------
# Kernel 1: latent projections + decoupled RoPE, head-major stores.
# ---------------------------------------------------------------------------
def _proj_kernel(x_ref, cos_ref, sin_ref,
                 wdkv_ref, wdq_ref, wuk_ref, wuv_ref, wuq_ref,
                 wkr_ref, wkrs_ref, wqr_ref, wqrs_ref,
                 q_ref, k_ref, v_ref, qr_ref, kr_ref,
                 *, n_heads, head_dim, d_R):
    x = x_ref[0]                                                       # (tp, D) bf16

    c_kv = jnp.dot(x, wdkv_ref[...], preferred_element_type=jnp.float32).astype(x.dtype)
    c_q = jnp.dot(x, wdq_ref[...], preferred_element_type=jnp.float32).astype(x.dtype)

    k_full = jnp.dot(c_kv, wuk_ref[...], preferred_element_type=jnp.float32)   # (tp, D)
    v_full = jnp.dot(c_kv, wuv_ref[...], preferred_element_type=jnp.float32)   # (tp, D)
    q_full = jnp.dot(c_q, wuq_ref[...], preferred_element_type=jnp.float32)    # scale folded

    cos_f = cos_ref[...]                                               # (tp, d_R) f32
    sin_s = sin_ref[...]                                               # (tp, d_R) f32 (signed)

    # rope(z) = z * cos_full + swap_halves(z) * sin_signed; swap folded into a
    # column-permuted weight copy -> pure full-width VPU elementwise, no slicing tricks.
    k16 = k_full.astype(x.dtype)
    kr = (jnp.dot(k16, wkr_ref[...], preferred_element_type=jnp.float32) * cos_f
          + jnp.dot(k16, wkrs_ref[...], preferred_element_type=jnp.float32) * sin_s)
    kr_ref[0] = kr.astype(kr_ref.dtype)                                # (tp, d_R)

    qr_lin = jnp.dot(c_q, wqr_ref[...], preferred_element_type=jnp.float32)    # (tp, H*d_R)
    qr_sw = jnp.dot(c_q, wqrs_ref[...], preferred_element_type=jnp.float32)

    # Head-major stores: at hd/d_R multiples of 128 these are pure lane-block slices.
    for h in range(n_heads):
        hs = slice(h * head_dim, (h + 1) * head_dim)
        q_ref[0, h] = q_full[:, hs].astype(q_ref.dtype)
        k_ref[0, h] = k_full[:, hs].astype(k_ref.dtype)
        v_ref[0, h] = v_full[:, hs].astype(v_ref.dtype)
        rs = slice(h * d_R, (h + 1) * d_R)
        qr_ref[0, h] = (qr_lin[:, rs] * cos_f + qr_sw[:, rs] * sin_s).astype(qr_ref.dtype)


# ---------------------------------------------------------------------------
# Kernel 2: flash-style attention.  grid = (B, H, T/tq, T/tk), kv axis last.
# ---------------------------------------------------------------------------
def _attn_kernel(q_ref, k_ref, v_ref, qr_ref, kr_ref, o_ref, m_sc, l_sc, acc_sc):
    kv_i = pl.program_id(3)

    @pl.when(kv_i == 0)
    def _init():
        m_sc[...] = jnp.full_like(m_sc, -jnp.inf)
        l_sc[...] = jnp.zeros_like(l_sc)
        acc_sc[...] = jnp.zeros_like(acc_sc)

    q = q_ref[0, 0]            # (tq, hd)  -- already scaled by 1/sqrt(hd + d_R)
    k = k_ref[0, 0]            # (tk, hd)
    v = v_ref[0, 0]            # (tk, hd)
    qr = qr_ref[0, 0]          # (tq, d_R) -- roped + scaled
    kr = kr_ref[0]             # (tk, d_R) -- roped, shared across heads

    # scores = q @ k.T + qr @ kr.T  (two MXU pushes, no lane-dim concatenation)
    s = jax.lax.dot_general(q, k, (((1,), (1,)), ((), ())),
                            preferred_element_type=jnp.float32)
    s += jax.lax.dot_general(qr, kr, (((1,), (1,)), ((), ())),
                             preferred_element_type=jnp.float32)

    m_prev = m_sc[...]
    m_new = jnp.maximum(m_prev, jnp.max(s, axis=-1, keepdims=True))
    alpha = jnp.exp(m_prev - m_new)
    p = jnp.exp(s - m_new)
    l_sc[...] = alpha * l_sc[...] + jnp.sum(p, axis=-1, keepdims=True)
    acc_sc[...] = alpha * acc_sc[...] + jnp.dot(p.astype(v.dtype), v,
                                                preferred_element_type=jnp.float32)
    m_sc[...] = m_new

    @pl.when(kv_i == pl.num_programs(3) - 1)
    def _finalize():
        # pl.reciprocal(approx=True): ~2^-12 rel err; fine at the validation tolerance.
        o_ref[0, 0] = (acc_sc[...] * pl.reciprocal(l_sc[...], approx=True)
                       ).astype(o_ref.dtype)


# ---------------------------------------------------------------------------
# Kernel 3: output projection consuming head-major ctx directly.
# grid = (B, T/tq, H) with H an 'arbitrary' reduction axis (W_O blocked by head rows).
# ---------------------------------------------------------------------------
def _out_proj_kernel(ctx_ref, wo_ref, bo_ref, o_ref, acc_ref):
    h = pl.program_id(2)

    @pl.when(h == 0)
    def _init():
        acc_ref[...] = jnp.broadcast_to(bo_ref[...].astype(jnp.float32), acc_ref.shape)

    acc_ref[...] += jnp.dot(ctx_ref[0, 0], wo_ref[...],
                            preferred_element_type=jnp.float32)

    @pl.when(h == pl.num_programs(2) - 1)
    def _store():
        o_ref[0] = acc_ref[...].astype(o_ref.dtype)


def _vmem_spec():
    # Untiled operand resident in VMEM for the whole call (single copy — avoids the
    # default 2x double-buffering of grid-invariant weights).
    return pl.BlockSpec(memory_space=pltpu.MemorySpace.VMEM)


def _pick_vmem_limit():
    """Per-generation scoped-VMEM budget (bytes)."""
    try:
        kind = jax.devices()[0].device_kind.lower()
    except Exception:
        kind = ""
    if "v5 lite" in kind or "v5e" in kind or "v6" in kind:
        return 100 * 1024 * 1024          # 128 MiB physical VMEM
    if "v7" in kind or "tpu7" in kind:
        return 48 * 1024 * 1024           # 64 MiB physical VMEM -> leave headroom
    return 32 * 1024 * 1024               # conservative default for other/unknown gens


def rope_tables(T, d_R):
    half = d_R // 2
    freq = jnp.arange(half, dtype=jnp.float32)
    inv_freq = 1.0 / (10000.0 ** (freq / half))
    t = jnp.arange(T, dtype=jnp.float32)
    freqs = t[:, None] * inv_freq[None, :]
    return jnp.sin(freqs), jnp.cos(freqs)


def mla_forward(x, params, n_heads, d_R, *, compute_dtype=jnp.bfloat16,
                out_dtype=None, proj_block=512, q_block=512, kv_block=512):
    B, T, D = x.shape
    hd = D // n_heads
    half = d_R // 2
    scale = 1.0 / math.sqrt(hd + d_R)
    cd = compute_dtype
    od = cd if out_dtype is None else out_dtype       # bf16 writeback halves final HBM traffic

    def _tile(blk):
        blk = min(blk, T)
        assert T % blk == 0, f"T={T} must be divisible by tile {blk}"
        return blk

    tp, tq, tk = _tile(proj_block), _tile(q_block), _tile(kv_block)

    # --- RoPE tables: single (T, d_R) full-width table + signed-sin companion. ---
    sin, cos = rope_tables(T, d_R)
    cos_full = jnp.concatenate([cos, cos], axis=-1)                  # (T, d_R)
    sin_signed = jnp.concatenate([-sin, sin], axis=-1)               # (T, d_R)

    # --- Weights: bf16 operands, scale folded into the query path, swap-companions. ---
    w_dkv = params['W_DKV'].astype(cd)
    w_dq = params['W_DQ'].astype(cd)
    w_uk = params['W_UK'].astype(cd)
    w_uv = params['W_UV'].astype(cd)
    w_uq = (params['W_UQ'] * scale).astype(cd)                       # fold 1/sqrt(hd+d_R)
    w_kr_f = params['W_KR']
    w_kr_sw_f = jnp.concatenate([w_kr_f[:, half:], w_kr_f[:, :half]], axis=1)
    w_qr_f = params['W_QR'] * scale                                  # fold 1/sqrt(hd+d_R)
    w_qr3 = w_qr_f.reshape(-1, n_heads, d_R)
    w_qr_sw_f = jnp.concatenate([w_qr3[..., half:], w_qr3[..., :half]],
                                axis=-1).reshape(w_qr_f.shape)
    w_kr, w_kr_sw, w_qr, w_qr_sw = (a.astype(cd)
                                    for a in (w_kr_f, w_kr_sw_f, w_qr_f, w_qr_sw_f))
    w_o = params['W_O'].astype(cd)
    b_o = params['b_O'].astype(jnp.float32)

    vmem_limit = _pick_vmem_limit()

    def cparams(sem):
        return pltpu.CompilerParams(dimension_semantics=sem,
                                    vmem_limit_bytes=vmem_limit)

    # bf16 input stream: halves proj-kernel input HBM traffic / VMEM double-buffer size.
    x16 = x.astype(cd)

    # ------------------------- 1) projections + RoPE (head-major out) ------------
    n_tp = T // tp
    tab_spec = pl.BlockSpec((tp, d_R), lambda b, ti: (ti, 0))
    hmaj_spec = lambda w: pl.BlockSpec((1, n_heads, tp, w), lambda b, ti: (b, 0, ti, 0))
    q, k, v, q_r, k_r = pl.pallas_call(
        functools.partial(_proj_kernel, n_heads=n_heads, head_dim=hd, d_R=d_R),
        out_shape=(
            jax.ShapeDtypeStruct((B, n_heads, T, hd), cd),           # Q  (scaled)
            jax.ShapeDtypeStruct((B, n_heads, T, hd), cd),           # K
            jax.ShapeDtypeStruct((B, n_heads, T, hd), cd),           # V
            jax.ShapeDtypeStruct((B, n_heads, T, d_R), cd),          # q_R (roped, scaled)
            jax.ShapeDtypeStruct((B, T, d_R), cd),                   # k_R (roped, shared)
        ),
        grid=(B, n_tp),
        in_specs=[pl.BlockSpec((1, tp, D), lambda b, ti: (b, ti, 0)),
                  tab_spec, tab_spec]
                 + [_vmem_spec() for _ in range(9)],
        out_specs=(
            hmaj_spec(hd), hmaj_spec(hd), hmaj_spec(hd), hmaj_spec(d_R),
            pl.BlockSpec((1, tp, d_R), lambda b, ti: (b, ti, 0)),
        ),
        compiler_params=cparams(("parallel", "parallel")),
    )(x16, cos_full, sin_signed,
      w_dkv, w_dq, w_uk, w_uv, w_uq, w_kr, w_kr_sw, w_qr, w_qr_sw)

    # ------------------------- 2) flash attention ---------------------------------
    n_q, n_kv = T // tq, T // tk
    ctx = pl.pallas_call(
        _attn_kernel,
        out_shape=jax.ShapeDtypeStruct((B, n_heads, T, hd), cd),
        grid=(B, n_heads, n_q, n_kv),
        in_specs=[
            pl.BlockSpec((1, 1, tq, hd), lambda b, h, qi, ki: (b, h, qi, 0)),
            pl.BlockSpec((1, 1, tk, hd), lambda b, h, qi, ki: (b, h, ki, 0)),
            pl.BlockSpec((1, 1, tk, hd), lambda b, h, qi, ki: (b, h, ki, 0)),
            pl.BlockSpec((1, 1, tq, d_R), lambda b, h, qi, ki: (b, h, qi, 0)),
            pl.BlockSpec((1, tk, d_R), lambda b, h, qi, ki: (b, ki, 0)),
        ],
        out_specs=pl.BlockSpec((1, 1, tq, hd), lambda b, h, qi, ki: (b, h, qi, 0)),
        scratch_shapes=[
            pltpu.VMEM((tq, 1), jnp.float32),      # running max
            pltpu.VMEM((tq, 1), jnp.float32),      # running denom
            pltpu.VMEM((tq, hd), jnp.float32),     # ctx accumulator
        ],
        compiler_params=cparams(("parallel", "parallel", "parallel", "arbitrary")),
    )(q, k, v, q_r, k_r)

    # ------------------------- 3) output projection (H-reduction, no head merge) ---
    out = pl.pallas_call(
        _out_proj_kernel,
        out_shape=jax.ShapeDtypeStruct((B, T, D), od),
        grid=(B, n_q, n_heads),
        in_specs=[
            pl.BlockSpec((1, 1, tq, hd), lambda b, qi, h: (b, h, qi, 0)),
            pl.BlockSpec((hd, D), lambda b, qi, h: (h, 0)),          # W_O head-row block
            _vmem_spec(),                                            # bias, resident
        ],
        out_specs=pl.BlockSpec((1, tq, D), lambda b, qi, h: (b, qi, 0)),
        scratch_shapes=[pltpu.VMEM((tq, D), jnp.float32)],
        compiler_params=cparams(("parallel", "parallel", "arbitrary")),
    )(ctx, w_o, b_o)
    return out


def init_params(key, d_out, d_c, d_R, n_heads):
    ks = jax.random.split(key, 9)

    def lin(k, fan_in, fan_out):
        bound = 1.0 / math.sqrt(fan_in)
        return jax.random.uniform(k, (fan_in, fan_out), jnp.float32, -bound, bound)

    return {
        'W_DKV': lin(ks[0], d_out, d_c),
        'W_DQ':  lin(ks[1], d_out, d_c),
        'W_UK':  lin(ks[2], d_c, d_out),
        'W_UV':  lin(ks[3], d_c, d_out),
        'W_UQ':  lin(ks[4], d_c, d_out),
        'W_KR':  lin(ks[5], d_out, d_R),
        'W_QR':  lin(ks[6], d_c, n_heads * d_R),
        'W_O':   lin(ks[7], d_out, d_out),
        'b_O':   jax.random.uniform(ks[8], (1, d_out), jnp.float32,
                                    -1.0 / math.sqrt(d_out), 1.0 / math.sqrt(d_out)),
    }


def mla_reference(x, p, sin, cos, n_heads, d_R):
    """Pure-JAX f32 reference with identical semantics, for validation."""
    B, T, D = x.shape
    hd = D // n_heads
    c_kv = x @ p['W_DKV']
    K = c_kv @ p['W_UK']
    V = c_kv @ p['W_UV']
    c_q = x @ p['W_DQ']
    Q = c_q @ p['W_UQ']

    def rope(z):
        h = d_R // 2
        z1, z2 = z[..., :h], z[..., h:]
        s = sin.reshape((1,) * (z.ndim - 2) + sin.shape)
        c = cos.reshape((1,) * (z.ndim - 2) + cos.shape)
        return jnp.concatenate([z1 * c - z2 * s, z1 * s + z2 * c], axis=-1)

    k_R = rope(K @ p['W_KR'])                                        # (B, T, d_R)
    Qh = Q.reshape(B, T, n_heads, hd).transpose(0, 2, 1, 3)
    Kh = K.reshape(B, T, n_heads, hd).transpose(0, 2, 1, 3)
    Vh = V.reshape(B, T, n_heads, hd).transpose(0, 2, 1, 3)
    qR = rope((c_q @ p['W_QR']).reshape(B, T, n_heads, d_R).transpose(0, 2, 1, 3))
    kR = jnp.broadcast_to(k_R[:, None], (B, n_heads, T, d_R))
    Qc = jnp.concatenate([Qh, qR], axis=-1)
    Kc = jnp.concatenate([Kh, kR], axis=-1)
    s = jnp.einsum('bhqd,bhkd->bhqk', Qc, Kc) / math.sqrt(hd + d_R)
    a = jax.nn.softmax(s, axis=-1)
    ctx = jnp.einsum('bhqk,bhkd->bhqd', a, Vh).transpose(0, 2, 1, 3).reshape(B, T, D)
    return ctx @ p['W_O'] + p['b_O']


if __name__ == "__main__":
    B, T = 2, 8
    d_in = d_out = 32
    n_heads, d_c, d_R = 4, 16, 8       # head_dim = 8
    dropout = 0.0                      # TODO(synk): nn.Dropout treated as eval-mode identity.

    key = jax.random.PRNGKey(0)
    kx, kp = jax.random.split(key)
    x = jax.random.normal(kx, (B, T, d_out), jnp.float32)
    params = init_params(kp, d_out, d_c, d_R, n_heads)

    out = mla_forward(x, params, n_heads, d_R)
    out = jax.block_until_ready(out)

    sin, cos = rope_tables(T, d_R)
    ref = mla_reference(x, params, sin, cos, n_heads, d_R)
    assert out.shape == (B, T, d_out)
    max_err = float(jnp.max(jnp.abs(out.astype(jnp.float32) - ref)))
    # Tolerance accounts for bf16 MXU operands + bf16 writeback (f32 accumulation);
    # typical max_err ~1e-2.
    assert max_err < 1e-1, f"max_err={max_err}"
    print("KERNEL_OK")
</pallas_src>

<mosaic_0001>
module attributes {stable_mosaic.version = 11 : i64} {
  func.func @_proj_kernel(%arg0: i32, %arg1: i32, %arg2: memref<1x8x32xbf16, #tpu.memory_space<vmem>>, %arg3: memref<8x8xf32, #tpu.memory_space<vmem>>, %arg4: memref<8x8xf32, #tpu.memory_space<vmem>>, %arg5: memref<32x16xbf16, #tpu.memory_space<vmem>>, %arg6: memref<32x16xbf16, #tpu.memory_space<vmem>>, %arg7: memref<16x32xbf16, #tpu.memory_space<vmem>>, %arg8: memref<16x32xbf16, #tpu.memory_space<vmem>>, %arg9: memref<16x32xbf16, #tpu.memory_space<vmem>>, %arg10: memref<32x8xbf16, #tpu.memory_space<vmem>>, %arg11: memref<32x8xbf16, #tpu.memory_space<vmem>>, %arg12: memref<16x32xbf16, #tpu.memory_space<vmem>>, %arg13: memref<16x32xbf16, #tpu.memory_space<vmem>>, %arg14: memref<1x4x8x8xbf16, #tpu.memory_space<vmem>>, %arg15: memref<1x4x8x8xbf16, #tpu.memory_space<vmem>>, %arg16: memref<1x4x8x8xbf16, #tpu.memory_space<vmem>>, %arg17: memref<1x4x8x8xbf16, #tpu.memory_space<vmem>>, %arg18: memref<1x8x8xbf16, #tpu.memory_space<vmem>>) attributes {dimension_semantics = [#tpu.dimension_semantics<parallel>, #tpu.dimension_semantics<parallel>], iteration_bounds = array<i64: 2, 1>, scalar_prefetch = 0 : i64, scratch_operands = 0 : i64, tpu.core_type = #tpu.core_type<tc>, window_params = [{transform_indices = @transform_0, window_bounds = array<i64: 1, 8, 32>}, {transform_indices = @transform_1, window_bounds = array<i64: 8, 8>}, {transform_indices = @transform_2, window_bounds = array<i64: 8, 8>}, {pipeline_mode = #tpu.pipeline_mode<synchronous>, transform_indices = @transform_3, window_bounds = array<i64: 32, 16>}, {pipeline_mode = #tpu.pipeline_mode<synchronous>, transform_indices = @transform_4, window_bounds = array<i64: 32, 16>}, {pipeline_mode = #tpu.pipeline_mode<synchronous>, transform_indices = @transform_5, window_bounds = array<i64: 16, 32>}, {pipeline_mode = #tpu.pipeline_mode<synchronous>, transform_indices = @transform_6, window_bounds = array<i64: 16, 32>}, {pipeline_mode = #tpu.pipeline_mode<synchronous>, transform_indices = @transform_7, window_bounds = array<i64: 16, 32>}, {pipeline_mode = #tpu.pipeline_mode<synchronous>, transform_indices = @transform_8, window_bounds = array<i64: 32, 8>}, {pipeline_mode = #tpu.pipeline_mode<synchronous>, transform_indices = @transform_9, window_bounds = array<i64: 32, 8>}, {pipeline_mode = #tpu.pipeline_mode<synchronous>, transform_indices = @transform_10, window_bounds = array<i64: 16, 32>}, {pipeline_mode = #tpu.pipeline_mode<synchronous>, transform_indices = @transform_11, window_bounds = array<i64: 16, 32>}, {transform_indices = @transform_12, window_bounds = array<i64: 1, 4, 8, 8>}, {transform_indices = @transform_13, window_bounds = array<i64: 1, 4, 8, 8>}, {transform_indices = @transform_14, window_bounds = array<i64: 1, 4, 8, 8>}, {transform_indices = @transform_15, window_bounds = array<i64: 1, 4, 8, 8>}, {transform_indices = @transform_16, window_bounds = array<i64: 1, 8, 8>}]} {
    %c0 = arith.constant 0 : index
    %c0_0 = arith.constant 0 : index
    %c0_1 = arith.constant 0 : index
    %0 = vector.load %arg2[%c0, %c0_0, %c0_1] : memref<1x8x32xbf16, #tpu.memory_space<vmem>>, vector<1x8x32xbf16>
    %1 = vector.shape_cast %0 : vector<1x8x32xbf16> to vector<8x32xbf16>
    %c0_2 = arith.constant 0 : index
    %c0_3 = arith.constant 0 : index
    %2 = vector.load %arg5[%c0_2, %c0_3] : memref<32x16xbf16, #tpu.memory_space<vmem>>, vector<32x16xbf16>
    %cst = arith.constant dense<0.000000e+00> : vector<8x16xf32>
    %3 = tpu.matmul %1, %2, %cst {dimension_numbers = #tpu.dot_dimension_numbers<[1], [0], [0], [1], [0, 0, 1, 1], [], []>} : vector<8x32xbf16>, vector<32x16xbf16>, vector<8x16xf32> -> vector<8x16xf32>
    %4 = arith.truncf %3 : vector<8x16xf32> to vector<8x16xbf16>
    %c0_4 = arith.constant 0 : index
    %c0_5 = arith.constant 0 : index
    %5 = vector.load %arg6[%c0_4, %c0_5] : memref<32x16xbf16, #tpu.memory_space<vmem>>, vector<32x16xbf16>
    %cst_6 = arith.constant dense<0.000000e+00> : vector<8x16xf32>
    %6 = tpu.matmul %1, %5, %cst_6 {dimension_numbers = #tpu.dot_dimension_numbers<[1], [0], [0], [1], [0, 0, 1, 1], [], []>} : vector<8x32xbf16>, vector<32x16xbf16>, vector<8x16xf32> -> vector<8x16xf32>
    %7 = arith.truncf %6 : vector<8x16xf32> to vector<8x16xbf16>
    %c0_7 = arith.constant 0 : index
    %c0_8 = arith.constant 0 : index
    %8 = vector.load %arg7[%c0_7, %c0_8] : memref<16x32xbf16, #tpu.memory_space<vmem>>, vector<16x32xbf16>
    %cst_9 = arith.constant dense<0.000000e+00> : vector<8x32xf32>
    %9 = tpu.matmul %4, %8, %cst_9 {dimension_numbers = #tpu.dot_dimension_numbers<[1], [0], [0], [1], [0, 0, 1, 1], [], []>} : vector<8x16xbf16>, vector<16x32xbf16>, vector<8x32xf32> -> vector<8x32xf32>
    %c0_10 = arith.constant 0 : index
    %c0_11 = arith.constant 0 : index
    %10 = vector.load %arg8[%c0_10, %c0_11] : memref<16x32xbf16, #tpu.memory_space<vmem>>, vector<16x32xbf16>
    %cst_12 = arith.constant dense<0.000000e+00> : vector<8x32xf32>
    %11 = tpu.matmul %4, %10, %cst_12 {dimension_numbers = #tpu.dot_dimension_numbers<[1], [0], [0], [1], [0, 0, 1, 1], [], []>} : vector<8x16xbf16>, vector<16x32xbf16>, vector<8x32xf32> -> vector<8x32xf32>
    %c0_13 = arith.constant 0 : index
    %c0_14 = arith.constant 0 : index
    %12 = vector.load %arg9[%c0_13, %c0_14] : memref<16x32xbf16, #tpu.memory_space<vmem>>, vector<16x32xbf16>
    %cst_15 = arith.constant dense<0.000000e+00> : vector<8x32xf32>
    %13 = tpu.matmul %7, %12, %cst_15 {dimension_numbers = #tpu.dot_dimension_numbers<[1], [0], [0], [1], [0, 0, 1, 1], [], []>} : vector<8x16xbf16>, vector<16x32xbf16>, vector<8x32xf32> -> vector<8x32xf32>
    %c0_16 = arith.constant 0 : index
    %c0_17 = arith.constant 0 : index
    %14 = vector.load %arg3[%c0_16, %c0_17] : memref<8x8xf32, #tpu.memory_space<vmem>>, vector<8x8xf32>
    %c0_18 = arith.constant 0 : index
    %c0_19 = arith.constant 0 : index
    %15 = vector.load %arg4[%c0_18, %c0_19] : memref<8x8xf32, #tpu.memory_space<vmem>>, vector<8x8xf32>
    %16 = arith.truncf %9 : vector<8x32xf32> to vector<8x32xbf16>
    %c0_20 = arith.constant 0 : index
    %c0_21 = arith.constant 0 : index
    %17 = vector.load %arg10[%c0_20, %c0_21] : memref<32x8xbf16, #tpu.memory_space<vmem>>, vector<32x8xbf16>
    %cst_22 = arith.constant dense<0.000000e+00> : vector<8x8xf32>
    %18 = tpu.matmul %16, %17, %cst_22 {dimension_numbers = #tpu.dot_dimension_numbers<[1], [0], [0], [1], [0, 0, 1, 1], [], []>} : vector<8x32xbf16>, vector<32x8xbf16>, vector<8x8xf32> -> vector<8x8xf32>
    %19 = arith.mulf %18, %14 : vector<8x8xf32>
    %c0_23 = arith.constant 0 : index
    %c0_24 = arith.constant 0 : index
    %20 = vector.load %arg11[%c0_23, %c0_24] : memref<32x8xbf16, #tpu.memory_space<vmem>>, vector<32x8xbf16>
    %cst_25 = arith.constant dense<0.000000e+00> : vector<8x8xf32>
    %21 = tpu.matmul %16, %20, %cst_25 {dimension_numbers = #tpu.dot_dimension_numbers<[1], [0], [0], [1], [0, 0, 1, 1], [], []>} : vector<8x32xbf16>, vector<32x8xbf16>, vector<8x8xf32> -> vector<8x8xf32>
    %22 = arith.mulf %21, %15 : vector<8x8xf32>
    %23 = arith.addf %19, %22 : vector<8x8xf32>
    %24 = arith.truncf %23 : vector<8x8xf32> to vector<8x8xbf16>
    %c0_26 = arith.constant 0 : index
    %c0_27 = arith.constant 0 : index
    %c0_28 = arith.constant 0 : index
    %25 = vector.load %arg18[%c0_26, %c0_27, %c0_28] : memref<1x8x8xbf16, #tpu.memory_space<vmem>>, vector<1x8x8xbf16>
    %26 = vector.shape_cast %25 : vector<1x8x8xbf16> to vector<8x8xbf16>
    %27 = vector.shape_cast %24 : vector<8x8xbf16> to vector<1x8x8xbf16>
    tpu.vector_store %arg18[%c0_26, %c0_27, %c0_28], %27 {strides = array<i32>} : memref<1x8x8xbf16, #tpu.memory_space<vmem>>, vector<1x8x8xbf16>,
    %c0_29 = arith.constant 0 : index
    %c0_30 = arith.constant 0 : index
    %28 = vector.load %arg12[%c0_29, %c0_30] : memref<16x32xbf16, #tpu.memory_space<vmem>>, vector<16x32xbf16>
    %cst_31 = arith.constant dense<0.000000e+00> : vector<8x32xf32>
    %29 = tpu.matmul %7, %28, %cst_31 {dimension_numbers = #tpu.dot_dimension_numbers<[1], [0], [0], [1], [0, 0, 1, 1], [], []>} : vector<8x16xbf16>, vector<16x32xbf16>, vector<8x32xf32> -> vector<8x32xf32>
    %c0_32 = arith.constant 0 : index
    %c0_33 = arith.constant 0 : index
    %30 = vector.load %arg13[%c0_32, %c0_33] : memref<16x32xbf16, #tpu.memory_space<vmem>>, vector<16x32xbf16>
    %cst_34 = arith.constant dense<0.000000e+00> : vector<8x32xf32>
    %31 = tpu.matmul %7, %30, %cst_34 {dimension_numbers = #tpu.dot_dimension_numbers<[1], [0], [0], [1], [0, 0, 1, 1], [], []>} : vector<8x16xbf16>, vector<16x32xbf16>, vector<8x32xf32> -> vector<8x32xf32>
    %32 = vector.extract_strided_slice %13 {offsets = [0, 0], sizes = [8, 8], strides = [1, 1]} : vector<8x32xf32> to vector<8x8xf32>
    %33 = arith.truncf %32 : vector<8x8xf32> to vector<8x8xbf16>
    %c0_35 = arith.constant 0 : index
    %c0_36 = arith.constant 0 : index
    %c0_37 = arith.constant 0 : index
    %c0_38 = arith.constant 0 : index
    %34 = vector.load %arg14[%c0_35, %c0_36, %c0_37, %c0_38] : memref<1x4x8x8xbf16, #tpu.memory_space<vmem>>, vector<1x1x8x8xbf16>
    %35 = vector.shape_cast %34 : vector<1x1x8x8xbf16> to vector<8x8xbf16>
    %36 = vector.shape_cast %33 : vector<8x8xbf16> to vector<1x1x8x8xbf16>
    tpu.vector_store %arg14[%c0_35, %c0_36, %c0_37, %c0_38], %36 {strides = array<i32>} : memref<1x4x8x8xbf16, #tpu.memory_space<vmem>>, vector<1x1x8x8xbf16>,
    %37 = vector.extract_strided_slice %9 {offsets = [0, 0], sizes = [8, 8], strides = [1, 1]} : vector<8x32xf32> to vector<8x8xf32>
    %38 = arith.truncf %37 : vector<8x8xf32> to vector<8x8xbf16>
    %c0_39 = arith.constant 0 : index
    %c0_40 = arith.constant 0 : index
    %c0_41 = arith.constant 0 : index
    %c0_42 = arith.constant 0 : index
    %39 = vector.load %arg15[%c0_39, %c0_40, %c0_41, %c0_42] : memref<1x4x8x8xbf16, #tpu.memory_space<vmem>>, vector<1x1x8x8xbf16>
    %40 = vector.shape_cast %39 : vector<1x1x8x8xbf16> to vector<8x8xbf16>
    %41 = vector.shape_cast %38 : vector<8x8xbf16> to vector<1x1x8x8xbf16>
    tpu.vector_store %arg15[%c0_39, %c0_40, %c0_41, %c0_42], %41 {strides = array<i32>} : memref<1x4x8x8xbf16, #tpu.memory_space<vmem>>, vector<1x1x8x8xbf16>,
    %42 = vector.extract_strided_slice %11 {offsets = [0, 0], sizes = [8, 8], strides = [1, 1]} : vector<8x32xf32> to vector<8x8xf32>
    %43 = arith.truncf %42 : vector<8x8xf32> to vector<8x8xbf16>
    %c0_43 = arith.constant 0 : index
    %c0_44 = arith.constant 0 : index
    %c0_45 = arith.constant 0 : index
    %c0_46 = arith.constant 0 : index
    %44 = vector.load %arg16[%c0_43, %c0_44, %c0_45, %c0_46] : memref<1x4x8x8xbf16, #tpu.memory_space<vmem>>, vector<1x1x8x8xbf16>
    %45 = vector.shape_cast %44 : vector<1x1x8x8xbf16> to vector<8x8xbf16>
    %46 = vector.shape_cast %43 : vector<8x8xbf16> to vector<1x1x8x8xbf16>
    tpu.vector_store %arg16[%c0_43, %c0_44, %c0_45, %c0_46], %46 {strides = array<i32>} : memref<1x4x8x8xbf16, #tpu.memory_space<vmem>>, vector<1x1x8x8xbf16>,
    %47 = vector.extract_strided_slice %29 {offsets = [0, 0], sizes = [8, 8], strides = [1, 1]} : vector<8x32xf32> to vector<8x8xf32>
    %48 = arith.mulf %47, %14 : vector<8x8xf32>
    %49 = vector.extract_strided_slice %31 {offsets = [0, 0], sizes = [8, 8], strides = [1, 1]} : vector<8x32xf32> to vector<8x8xf32>
    %50 = arith.mulf %49, %15 : vector<8x8xf32>
    %51 = arith.addf %48, %50 : vector<8x8xf32>
    %52 = arith.truncf %51 : vector<8x8xf32> to vector<8x8xbf16>
    %c0_47 = arith.constant 0 : index
    %c0_48 = arith.constant 0 : index
    %c0_49 = arith.constant 0 : index
    %c0_50 = arith.constant 0 : index
    %53 = vector.load %arg17[%c0_47, %c0_48, %c0_49, %c0_50] : memref<1x4x8x8xbf16, #tpu.memory_space<vmem>>, vector<1x1x8x8xbf16>
    %54 = vector.shape_cast %53 : vector<1x1x8x8xbf16> to vector<8x8xbf16>
    %55 = vector.shape_cast %52 : vector<8x8xbf16> to vector<1x1x8x8xbf16>
    tpu.vector_store %arg17[%c0_47, %c0_48, %c0_49, %c0_50], %55 {strides = array<i32>} : memref<1x4x8x8xbf16, #tpu.memory_space<vmem>>, vector<1x1x8x8xbf16>,
    %56 = vector.extract_strided_slice %13 {offsets = [0, 8], sizes = [8, 8], strides = [1, 1]} : vector<8x32xf32> to vector<8x8xf32>
    %57 = arith.truncf %56 : vector<8x8xf32> to vector<8x8xbf16>
    %c0_51 = arith.constant 0 : index
    %c1 = arith.constant 1 : index
    %c0_52 = arith.constant 0 : index
    %c0_53 = arith.constant 0 : index
    %58 = vector.load %arg14[%c0_51, %c1, %c0_52, %c0_53] : memref<1x4x8x8xbf16, #tpu.memory_space<vmem>>, vector<1x1x8x8xbf16>
    %59 = vector.shape_cast %58 : vector<1x1x8x8xbf16> to vector<8x8xbf16>
    %60 = vector.shape_cast %57 : vector<8x8xbf16> to vector<1x1x8x8xbf16>
    tpu.vector_store %arg14[%c0_51, %c1, %c0_52, %c0_53], %60 {strides = array<i32>} : memref<1x4x8x8xbf16, #tpu.memory_space<vmem>>, vector<1x1x8x8xbf16>,
    %61 = vector.extract_strided_slice %9 {offsets = [0, 8], sizes = [8, 8], strides = [1, 1]} : vector<8x32xf32> to vector<8x8xf32>
    %62 = arith.truncf %61 : vector<8x8xf32> to vector<8x8xbf16>
    %c0_54 = arith.constant 0 : index
    %c1_55 = arith.constant 1 : index
    %c0_56 = arith.constant 0 : index
    %c0_57 = arith.constant 0 : index
    %63 = vector.load %arg15[%c0_54, %c1_55, %c0_56, %c0_57] : memref<1x4x8x8xbf16, #tpu.memory_space<vmem>>, vector<1x1x8x8xbf16>
    %64 = vector.shape_cast %63 : vector<1x1x8x8xbf16> to vector<8x8xbf16>
    %65 = vector.shape_cast %62 : vector<8x8xbf16> to vector<1x1x8x8xbf16>
    tpu.vector_store %arg15[%c0_54, %c1_55, %c0_56, %c0_57], %65 {strides = array<i32>} : memref<1x4x8x8xbf16, #tpu.memory_space<vmem>>, vector<1x1x8x8xbf16>,
    %66 = vector.extract_strided_slice %11 {offsets = [0, 8], sizes = [8, 8], strides = [1, 1]} : vector<8x32xf32> to vector<8x8xf32>
    %67 = arith.truncf %66 : vector<8x8xf32> to vector<8x8xbf16>
    %c0_58 = arith.constant 0 : index
    %c1_59 = arith.constant 1 : index
    %c0_60 = arith.constant 0 : index
    %c0_61 = arith.constant 0 : index
    %68 = vector.load %arg16[%c0_58, %c1_59, %c0_60, %c0_61] : memref<1x4x8x8xbf16, #tpu.memory_space<vmem>>, vector<1x1x8x8xbf16>
    %69 = vector.shape_cast %68 : vector<1x1x8x8xbf16> to vector<8x8xbf16>
    %70 = vector.shape_cast %67 : vector<8x8xbf16> to vector<1x1x8x8xbf16>
    tpu.vector_store %arg16[%c0_58, %c1_59, %c0_60, %c0_61], %70 {strides = array<i32>} : memref<1x4x8x8xbf16, #tpu.memory_space<vmem>>, vector<1x1x8x8xbf16>,
    %71 = vector.extract_strided_slice %29 {offsets = [0, 8], sizes = [8, 8], strides = [1, 1]} : vector<8x32xf32> to vector<8x8xf32>
    %72 = arith.mulf %71, %14 : vector<8x8xf32>
    %73 = vector.extract_strided_slice %31 {offsets = [0, 8], sizes = [8, 8], strides = [1, 1]} : vector<8x32xf32> to vector<8x8xf32>
    %74 = arith.mulf %73, %15 : vector<8x8xf32>
    %75 = arith.addf %72, %74 : vector<8x8xf32>
    %76 = arith.truncf %75 : vector<8x8xf32> to vector<8x8xbf16>
    %c0_62 = arith.constant 0 : index
    %c1_63 = arith.constant 1 : index
    %c0_64 = arith.constant 0 : index
    %c0_65 = arith.constant 0 : index
    %77 = vector.load %arg17[%c0_62, %c1_63, %c0_64, %c0_65] : memref<1x4x8x8xbf16, #tpu.memory_space<vmem>>, vector<1x1x8x8xbf16>
    %78 = vector.shape_cast %77 : vector<1x1x8x8xbf16> to vector<8x8xbf16>
    %79 = vector.shape_cast %76 : vector<8x8xbf16> to vector<1x1x8x8xbf16>
    tpu.vector_store %arg17[%c0_62, %c1_63, %c0_64, %c0_65], %79 {strides = array<i32>} : memref<1x4x8x8xbf16, #tpu.memory_space<vmem>>, vector<1x1x8x8xbf16>,
    %80 = vector.extract_strided_slice %13 {offsets = [0, 16], sizes = [8, 8], strides = [1, 1]} : vector<8x32xf32> to vector<8x8xf32>
    %81 = arith.truncf %80 : vector<8x8xf32> to vector<8x8xbf16>
    %c0_66 = arith.constant 0 : index
    %c2 = arith.constant 2 : index
    %c0_67 = arith.constant 0 : index
    %c0_68 = arith.constant 0 : index
    %82 = vector.load %arg14[%c0_66, %c2, %c0_67, %c0_68] : memref<1x4x8x8xbf16, #tpu.memory_space<vmem>>, vector<1x1x8x8xbf16>
    %83 = vector.shape_cast %82 : vector<1x1x8x8xbf16> to vector<8x8xbf16>
    %84 = vector.shape_cast %81 : vector<8x8xbf16> to vector<1x1x8x8xbf16>
    tpu.vector_store %arg14[%c0_66, %c2, %c0_67, %c0_68], %84 {strides = array<i32>} : memref<1x4x8x8xbf16, #tpu.memory_space<vmem>>, vector<1x1x8x8xbf16>,
    %85 = vector.extract_strided_slice %9 {offsets = [0, 16], sizes = [8, 8], strides = [1, 1]} : vector<8x32xf32> to vector<8x8xf32>
    %86 = arith.truncf %85 : vector<8x8xf32> to vector<8x8xbf16>
    %c0_69 = arith.constant 0 : index
    %c2_70 = arith.constant 2 : index
    %c0_71 = arith.constant 0 : index
    %c0_72 = arith.constant 0 : index
    %87 = vector.load %arg15[%c0_69, %c2_70, %c0_71, %c0_72] : memref<1x4x8x8xbf16, #tpu.memory_space<vmem>>, vector<1x1x8x8xbf16>
    %88 = vector.shape_cast %87 : vector<1x1x8x8xbf16> to vector<8x8xbf16>
    %89 = vector.shape_cast %86 : vector<8x8xbf16> to vector<1x1x8x8xbf16>
    tpu.vector_store %arg15[%c0_69, %c2_70, %c0_71, %c0_72], %89 {strides = array<i32>} : memref<1x4x8x8xbf16, #tpu.memory_space<vmem>>, vector<1x1x8x8xbf16>,
    %90 = vector.extract_strided_slice %11 {offsets = [0, 16], sizes = [8, 8], strides = [1, 1]} : vector<8x32xf32> to vector<8x8xf32>
    %91 = arith.truncf %90 : vector<8x8xf32> to vector<8x8xbf16>
    %c0_73 = arith.constant 0 : index
    %c2_74 = arith.constant 2 : index
    %c0_75 = arith.constant 0 : index
    %c0_76 = arith.constant 0 : index
    %92 = vector.load %arg16[%c0_73, %c2_74, %c0_75, %c0_76] : memref<1x4x8x8xbf16, #tpu.memory_space<vmem>>, vector<1x1x8x8xbf16>
    %93 = vector.shape_cast %92 : vector<1x1x8x8xbf16> to vector<8x8xbf16>
    %94 = vector.shape_cast %91 : vector<8x8xbf16> to vector<1x1x8x8xbf16>
    tpu.vector_store %arg16[%c0_73, %c2_74, %c0_75, %c0_76], %94 {strides = array<i32>} : memref<1x4x8x8xbf16, #tpu.memory_space<vmem>>, vector<1x1x8x8xbf16>,
    %95 = vector.extract_strided_slice %29 {offsets = [0, 16], sizes = [8, 8], strides = [1, 1]} : vector<8x32xf32> to vector<8x8xf32>
    %96 = arith.mulf %95, %14 : vector<8x8xf32>
    %97 = vector.extract_strided_slice %31 {offsets = [0, 16], sizes = [8, 8], strides = [1, 1]} : vector<8x32xf32> to vector<8x8xf32>
    %98 = arith.mulf %97, %15 : vector<8x8xf32>
    %99 = arith.addf %96, %98 : vector<8x8xf32>
    %100 = arith.truncf %99 : vector<8x8xf32> to vector<8x8xbf16>
    %c0_77 = arith.constant 0 : index
    %c2_78 = arith.constant 2 : index
    %c0_79 = arith.constant 0 : index
    %c0_80 = arith.constant 0 : index
    %101 = vector.load %arg17[%c0_77, %c2_78, %c0_79, %c0_80] : memref<1x4x8x8xbf16, #tpu.memory_space<vmem>>, vector<1x1x8x8xbf16>
    %102 = vector.shape_cast %101 : vector<1x1x8x8xbf16> to vector<8x8xbf16>
    %103 = vector.shape_cast %100 : vector<8x8xbf16> to vector<1x1x8x8xbf16>
    tpu.vector_store %arg17[%c0_77, %c2_78, %c0_79, %c0_80], %103 {strides = array<i32>} : memref<1x4x8x8xbf16, #tpu.memory_space<vmem>>, vector<1x1x8x8xbf16>,
    %104 = vector.extract_strided_slice %13 {offsets = [0, 24], sizes = [8, 8], strides = [1, 1]} : vector<8x32xf32> to vector<8x8xf32>
    %105 = arith.truncf %104 : vector<8x8xf32> to vector<8x8xbf16>
    %c0_81 = arith.constant 0 : index
    %c3 = arith.constant 3 : index
    %c0_82 = arith.constant 0 : index
    %c0_83 = arith.constant 0 : index
    %106 = vector.load %arg14[%c0_81, %c3, %c0_82, %c0_83] : memref<1x4x8x8xbf16, #tpu.memory_space<vmem>>, vector<1x1x8x8xbf16>
    %107 = vector.shape_cast %106 : vector<1x1x8x8xbf16> to vector<8x8xbf16>
    %108 = vector.shape_cast %105 : vector<8x8xbf16> to vector<1x1x8x8xbf16>
    tpu.vector_store %arg14[%c0_81, %c3, %c0_82, %c0_83], %108 {strides = array<i32>} : memref<1x4x8x8xbf16, #tpu.memory_space<vmem>>, vector<1x1x8x8xbf16>,
    %109 = vector.extract_strided_slice %9 {offsets = [0, 24], sizes = [8, 8], strides = [1, 1]} : vector<8x32xf32> to vector<8x8xf32>
    %110 = arith.truncf %109 : vector<8x8xf32> to vector<8x8xbf16>
    %c0_84 = arith.constant 0 : index
    %c3_85 = arith.constant 3 : index
    %c0_86 = arith.constant 0 : index
    %c0_87 = arith.constant 0 : index
    %111 = vector.load %arg15[%c0_84, %c3_85, %c0_86, %c0_87] : memref<1x4x8x8xbf16, #tpu.memory_space<vmem>>, vector<1x1x8x8xbf16>
    %112 = vector.shape_cast %111 : vector<1x1x8x8xbf16> to vector<8x8xbf16>
    %113 = vector.shape_cast %110 : vector<8x8xbf16> to vector<1x1x8x8xbf16>
    tpu.vector_store %arg15[%c0_84, %c3_85, %c0_86, %c0_87], %113 {strides = array<i32>} : memref<1x4x8x8xbf16, #tpu.memory_space<vmem>>, vector<1x1x8x8xbf16>,
    %114 = vector.extract_strided_slice %11 {offsets = [0, 24], sizes = [8, 8], strides = [1, 1]} : vector<8x32xf32> to vector<8x8xf32>
    %115 = arith.truncf %114 : vector<8x8xf32> to vector<8x8xbf16>
    %c0_88 = arith.constant 0 : index
    %c3_89 = arith.constant 3 : index
    %c0_90 = arith.constant 0 : index
    %c0_91 = arith.constant 0 : index
    %116 = vector.load %arg16[%c0_88, %c3_89, %c0_90, %c0_91] : memref<1x4x8x8xbf16, #tpu.memory_space<vmem>>, vector<1x1x8x8xbf16>
    %117 = vector.shape_cast %116 : vector<1x1x8x8xbf16> to vector<8x8xbf16>
    %118 = vector.shape_cast %115 : vector<8x8xbf16> to vector<1x1x8x8xbf16>
    tpu.vector_store %arg16[%c0_88, %c3_89, %c0_90, %c0_91], %118 {strides = array<i32>} : memref<1x4x8x8xbf16, #tpu.memory_space<vmem>>, vector<1x1x8x8xbf16>,
    %119 = vector.extract_strided_slice %29 {offsets = [0, 24], sizes = [8, 8], strides = [1, 1]} : vector<8x32xf32> to vector<8x8xf32>
    %120 = arith.mulf %119, %14 : vector<8x8xf32>
    %121 = vector.extract_strided_slice %31 {offsets = [0, 24], sizes = [8, 8], strides = [1, 1]} : vector<8x32xf32> to vector<8x8xf32>
    %122 = arith.mulf %121, %15 : vector<8x8xf32>
    %123 = arith.addf %120, %122 : vector<8x8xf32>
    %124 = arith.truncf %123 : vector<8x8xf32> to vector<8x8xbf16>
    %c0_92 = arith.constant 0 : index
    %c3_93 = arith.constant 3 : index
    %c0_94 = arith.constant 0 : index
    %c0_95 = arith.constant 0 : index
    %125 = vector.load %arg17[%c0_92, %c3_93, %c0_94, %c0_95] : memref<1x4x8x8xbf16, #tpu.memory_space<vmem>>, vector<1x1x8x8xbf16>
    %126 = vector.shape_cast %125 : vector<1x1x8x8xbf16> to vector<8x8xbf16>
    %127 = vector.shape_cast %124 : vector<8x8xbf16> to vector<1x1x8x8xbf16>
    tpu.vector_store %arg17[%c0_92, %c3_93, %c0_94, %c0_95], %127 {strides = array<i32>} : memref<1x4x8x8xbf16, #tpu.memory_space<vmem>>, vector<1x1x8x8xbf16>,
    return
  }
  func.func @transform_0(%arg0: i32, %arg1: i32) -> (i32, i32, i32) {
    %c0_i32 = arith.constant 0 : i32
    %c0_i32_0 = arith.constant 0 : i32
    return %arg0, %arg1, %c0_i32 : i32, i32, i32
  }
  func.func @transform_1(%arg0: i32, %arg1: i32) -> (i32, i32) {
    %c0_i32 = arith.constant 0 : i32
    %c0_i32_0 = arith.constant 0 : i32
    return %arg1, %c0_i32 : i32, i32
  }
  func.func @transform_2(%arg0: i32, %arg1: i32) -> (i32, i32) {
    %c0_i32 = arith.constant 0 : i32
    %c0_i32_0 = arith.constant 0 : i32
    return %arg1, %c0_i32 : i32, i32
  }
  func.func @transform_3(%arg0: i32, %arg1: i32) -> (i32, i32) {
    %c0_i32 = arith.constant 0 : i32
    %c0_i32_0 = arith.constant 0 : i32
    %c0_i32_1 = arith.constant 0 : i32
    return %c0_i32, %c0_i32_0 : i32, i32
  }
  func.func @transform_4(%arg0: i32, %arg1: i32) -> (i32, i32) {
    %c0_i32 = arith.constant 0 : i32
    %c0_i32_0 = arith.constant 0 : i32
    %c0_i32_1 = arith.constant 0 : i32
    return %c0_i32, %c0_i32_0 : i32, i32
  }
  func.func @transform_5(%arg0: i32, %arg1: i32) -> (i32, i32) {
    %c0_i32 = arith.constant 0 : i32
    %c0_i32_0 = arith.constant 0 : i32
    %c0_i32_1 = arith.constant 0 : i32
    return %c0_i32, %c0_i32_0 : i32, i32
  }
  func.func @transform_6(%arg0: i32, %arg1: i32) -> (i32, i32) {
    %c0_i32 = arith.constant 0 : i32
    %c0_i32_0 = arith.constant 0 : i32
    %c0_i32_1 = arith.constant 0 : i32
    return %c0_i32, %c0_i32_0 : i32, i32
  }
  func.func @transform_7(%arg0: i32, %arg1: i32) -> (i32, i32) {
    %c0_i32 = arith.constant 0 : i32
    %c0_i32_0 = arith.constant 0 : i32
    %c0_i32_1 = arith.constant 0 : i32
    return %c0_i32, %c0_i32_0 : i32, i32
  }
  func.func @transform_8(%arg0: i32, %arg1: i32) -> (i32, i32) {
    %c0_i32 = arith.constant 0 : i32
    %c0_i32_0 = arith.constant 0 : i32
    %c0_i32_1 = arith.constant 0 : i32
    return %c0_i32, %c0_i32_0 : i32, i32
  }
  func.func @transform_9(%arg0: i32, %arg1: i32) -> (i32, i32) {
    %c0_i32 = arith.constant 0 : i32
    %c0_i32_0 = arith.constant 0 : i32
    %c0_i32_1 = arith.constant 0 : i32
    return %c0_i32, %c0_i32_0 : i32, i32
  }
  func.func @transform_10(%arg0: i32, %arg1: i32) -> (i32, i32) {
    %c0_i32 = arith.constant 0 : i32
    %c0_i32_0 = arith.constant 0 : i32
    %c0_i32_1 = arith.constant 0 : i32
    return %c0_i32, %c0_i32_0 : i32, i32
  }
  func.func @transform_11(%arg0: i32, %arg1: i32) -> (i32, i32) {
    %c0_i32 = arith.constant 0 : i32
    %c0_i32_0 = arith.constant 0 : i32
    %c0_i32_1 = arith.constant 0 : i32
    return %c0_i32, %c0_i32_0 : i32, i32
  }
  func.func @transform_12(%arg0: i32, %arg1: i32) -> (i32, i32, i32, i32) {
    %c0_i32 = arith.constant 0 : i32
    %c0_i32_0 = arith.constant 0 : i32
    %c0_i32_1 = arith.constant 0 : i32
    return %arg0, %c0_i32, %arg1, %c0_i32_0 : i32, i32, i32, i32
  }
  func.func @transform_13(%arg0: i32, %arg1: i32) -> (i32, i32, i32, i32) {
    %c0_i32 = arith.constant 0 : i32
    %c0_i32_0 = arith.constant 0 : i32
    %c0_i32_1 = arith.constant 0 : i32
    return %arg0, %c0_i32, %arg1, %c0_i32_0 : i32, i32, i32, i32
  }
  func.func @transform_14(%arg0: i32, %arg1: i32) -> (i32, i32, i32, i32) {
    %c0_i32 = arith.constant 0 : i32
    %c0_i32_0 = arith.constant 0 : i32
    %c0_i32_1 = arith.constant 0 : i32
    return %arg0, %c0_i32, %arg1, %c0_i32_0 : i32, i32, i32, i32
  }
  func.func @transform_15(%arg0: i32, %arg1: i32) -> (i32, i32, i32, i32) {
    %c0_i32 = arith.constant 0 : i32
    %c0_i32_0 = arith.constant 0 : i32
    %c0_i32_1 = arith.constant 0 : i32
    return %arg0, %c0_i32, %arg1, %c0_i32_0 : i32, i32, i32, i32
  }
  func.func @transform_16(%arg0: i32, %arg1: i32) -> (i32, i32, i32) {
    %c0_i32 = arith.constant 0 : i32
    %c0_i32_0 = arith.constant 0 : i32
    return %arg0, %arg1, %c0_i32 : i32, i32, i32
  }
}

</mosaic_0001>

<llo_original>
// kernel: tpu_custom_call.1
$region0: #{tpu_custom_call.1}
  #allocation0 [shape = 'u32[]', space=smem, size = 0x4, offset = 0x4, fixed_abs, tag = 'smem constant byte address 0x4 - core index']
  #allocation1 [shape = 'u32[144,128]{1,0:T(1,128)}', space=vmem, size = 0x12000, scoped, tag = 'internal scratch']
  %s0 = inlined_call_operand.vmem [shape: bf16[2,8,32], index: 0, kind: input, shape index: {}]
  %s1 = inlined_call_operand.vmem [shape: f32[8,8], index: 1, kind: input, shape index: {}]
  %s2 = inlined_call_operand.vmem [shape: f32[8,8], index: 2, kind: input, shape index: {}]
  %s3 = inlined_call_operand.vmem [shape: bf16[32,16], index: 3, kind: input, shape index: {}]
  %s4 = inlined_call_operand.vmem [shape: bf16[32,16], index: 4, kind: input, shape index: {}]
  %s5 = inlined_call_operand.vmem [shape: bf16[16,32], index: 5, kind: input, shape index: {}]
  %s6 = inlined_call_operand.vmem [shape: bf16[16,32], index: 6, kind: input, shape index: {}]
  %s7 = inlined_call_operand.vmem [shape: bf16[16,32], index: 7, kind: input, shape index: {}]
  %s8 = inlined_call_operand.vmem [shape: bf16[32,8], index: 8, kind: input, shape index: {}]
  %s9 = inlined_call_operand.vmem [shape: bf16[32,8], index: 9, kind: input, shape index: {}]
  %s10 = inlined_call_operand.vmem [shape: bf16[16,32], index: 10, kind: input, shape index: {}]
  %s11 = inlined_call_operand.vmem [shape: bf16[16,32], index: 11, kind: input, shape index: {}]
  %s12 = inlined_call_operand.hbm [shape: bf16[2,4,8,8], index: 12, kind: output, shape index: {0}]
  %s13 = inlined_call_operand.hbm [shape: bf16[2,4,8,8], index: 13, kind: output, shape index: {1}]
  %s14 = inlined_call_operand.hbm [shape: bf16[2,4,8,8], index: 14, kind: output, shape index: {2}]
  %s15 = inlined_call_operand.hbm [shape: bf16[2,4,8,8], index: 15, kind: output, shape index: {3}]
  %s16 = inlined_call_operand.hbm [shape: bf16[2,8,8], index: 16, kind: output, shape index: {4}]
  %17 = xla_tuple %s12, %s13, %s14, %s15, %s16
  %s18 = sld [smem:[#allocation0]]
  $region113: #{tpu_custom_call.1} parent=0
    _
  %s20 = ssub.s32 1, %s18
  %s21 = scalar_select 0, %s20, %s18
  $region1: #{tpu_custom_call.1} parent=0
    #allocation2 [shape = 'u8[16384]{0}', space=vmem, size = 0x4000, scoped, tag = 'output window, operand 0']
    #allocation3 [shape = 's32[2]{0}', space=sflag, size = 0x8, scoped, tag = 'scoped memory for tpu_custom_call.1']
    #allocation4 [shape = 'u8[16384]{0}', space=vmem, size = 0x4000, scoped, tag = 'output window, operand 1']
    #allocation5 [shape = 's32[2]{0}', space=sflag, size = 0x8, scoped, tag = 'scoped memory for tpu_custom_call.1']
    #allocation6 [shape = 'u8[16384]{0}', space=vmem, size = 0x4000, scoped, tag = 'output window, operand 2']
    #allocation7 [shape = 'u8[16384]{0}', space=vmem, size = 0x4000, scoped, tag = 'output window, operand 3']
    #allocation8 [shape = 's32[2]{0}', space=sflag, size = 0x8, scoped, tag = 'scoped memory for tpu_custom_call.1']
    #allocation9 [shape = 'u8[4096]{0}', space=vmem, size = 0x1000, scoped, tag = 'output window, operand 4']
    %22 = vsyncpa [#allocation3], 0
    %s23 = scalar_lea.sflag [#allocation3], 1
    %24 = vsyncpa %s23, 0
    %25 = vsyncpa [#allocation5], 0
    %s26 = scalar_lea.sflag [#allocation5], 1
    %27 = vsyncpa %s26, 0
    %28 = vsyncpa [#allocation8], 0
    %s29 = scalar_lea.sflag [#allocation8], 1
    %30 = vsyncpa %s29, 0
    loop: start=0, step=1, limit=4
    $region2: #{tpu_custom_call.1} parent=1 // loop_pre_header
      _
    $region3: #{tpu_custom_call.1} parent=1 // loop_header
      %s32 = sphi 0, %s36
      %p33 = scmp.ge.s32.totalorder %s32, 4
      %s39 = sphi 0, %s51
      %s40 = sphi 0, %s47
      %s41 = sphi 0, %s39
      %s42 = sphi 0, %s40
      %s43 = sphi 0, %s41
      %s44 = sphi 0, %s42
      %s56 = sphi 0, %s58
      %s59 = sphi 0, %s56
      %s60 = sphi 0, %s59
      %s76 = sphi 0, %s60
      %s82 = sphi 0, %s84
      %s85 = sphi 0, %s82
      %s86 = sphi 0, %s85
      %s102 = sphi 0, %s86
      %s108 = sphi 0, %s110
      %s111 = sphi 0, %s108
      %s112 = sphi 0, %s111
      %s128 = sphi 0, %s112
      %s132 = sphi 0, %s132
      %s134 = sphi 0, %s132
      %s135 = sphi 0, %s134
      %s149 = sphi 0, %s135
      %s153 = sphi 0, %s153
      %s155 = sphi 0, %s153
      %s156 = sphi 0, %s155
      %s170 = sphi 0, %s156
      %s174 = sphi 0, %s174
      %s176 = sphi 0, %s174
      %s177 = sphi 0, %s176
      %s191 = sphi 0, %s177
      %s195 = sphi 0, %s195
      %s197 = sphi 0, %s195
      %s198 = sphi 0, %s197
      %s212 = sphi 0, %s198
      %s216 = sphi 0, %s216
      %s218 = sphi 0, %s216
      %s219 = sphi 0, %s218
      %s233 = sphi 0, %s219
      %s237 = sphi 0, %s237
      %s239 = sphi 0, %s237
      %s240 = sphi 0, %s239
      %s254 = sphi 0, %s240
      %s258 = sphi 0, %s258
      %s260 = sphi 0, %s258
      %s261 = sphi 0, %s260
      %s275 = sphi 0, %s261
      %s279 = sphi 0, %s279
      %s281 = sphi 0, %s279
      %s282 = sphi 0, %s281
      %s296 = sphi 0, %s282
      %s300 = sphi 0, %s300
      %s302 = sphi 0, %s300
      %s303 = sphi 0, %s302
      %s317 = sphi 0, %s303
      %s325 = sphi 0, %s327
      %s328 = sphi 0, %s325
      %s329 = sphi 0, %s328
      %s345 = sphi 0, %s329
      %s353 = sphi 0, %s355
      %s356 = sphi 0, %s353
      %s357 = sphi 0, %s356
      %s373 = sphi 0, %s357
      %s381 = sphi 0, %s383
      %s384 = sphi 0, %s381
      %s385 = sphi 0, %s384
      %s401 = sphi 0, %s385
      %s409 = sphi 0, %s411
      %s412 = sphi 0, %s409
      %s413 = sphi 0, %s412
      %s429 = sphi 0, %s413
      %s437 = sphi 0, %s439
      %s440 = sphi 0, %s437
      %s441 = sphi 0, %s440
      %s457 = sphi 0, %s441
    $region4: #{tpu_custom_call.1} parent=1 // loop_header_branch
      %35 = sbr.rel (%p33) target = $region8
    $region5: #{tpu_custom_call.1} parent=1 // loop_body
      %s37 = ssub.s32 %s32, 1
      %s38 = ssub.s32 %s32, 2
      %s45 = sadd.s32 1, %s40
      %p46 = scmp.ge.s32.totalorder %s45, 1
      %s47 = scalar_select %p46, 0, %s45
      %s48 = sadd.s32 1, %s39
      %s49 = scalar_select %p46, %s48, %s39
      %p50 = scmp.ge.s32.totalorder %s49, 2
      %s51 = scalar_select %p50, 0, %s49
      %s52 = ssub.s32 %s39, %s51
      %s53 = ssub.s32 %s40, %s47
      %s54 = sor.u32 %s52, %s53
      %p55 = scmp.eq.s32.totalorder %s54, 0
      %s57 = sadd.s32 %s56, 1
      %s58 = scalar_select %p55, %s56, %s57
      %p61 = pneg %p55
      %p62 = scmp.eq.s32.totalorder %s32, 1
      %p63 = por %p61, %p62
      %p64 = scmp.ne.s32.totalorder %s56, %s59
      %p65 = scmp.eq.s32.totalorder %s32, 0
      %p66 = por %p64, %p65
      %p67 = scmp.ne.s32.totalorder %s56, %s59
      %p68 = scmp.eq.s32.totalorder %s37, 1
      %p69 = por %p67, %p68
      %p70 = scmp.ne.s32.totalorder %s59, %s60
      %p71 = scmp.eq.s32.totalorder %s37, 0
      %p72 = por %p70, %p71
      %p73 = scmp.ne.s32.totalorder %s59, %s60
      %p74 = scmp.eq.s32.totalorder %s38, 1
      %p75 = por %p73, %p74
      %p77 = scmp.ne.s32.totalorder %s60, %s76
      %p78 = scmp.eq.s32.totalorder %s38, 0
      %p79 = por %p77, %p78
      %s80 = ssub.s32 %s40, %s47
      %p81 = scmp.eq.s32.totalorder %s80, 0
      %s83 = sadd.s32 %s82, 1
      %s84 = scalar_select %p81, %s82, %s83
      %p87 = pneg %p81
      %p88 = scmp.eq.s32.totalorder %s32, 1
      %p89 = por %p87, %p88
      %p90 = scmp.ne.s32.totalorder %s82, %s85
      %p91 = scmp.eq.s32.totalorder %s32, 0
      %p92 = por %p90, %p91
      %p93 = scmp.ne.s32.totalorder %s82, %s85
      %p94 = scmp.eq.s32.totalorder %s37, 1
      %p95 = por %p93, %p94
      %p96 = scmp.ne.s32.totalorder %s85, %s86
      %p97 = scmp.eq.s32.totalorder %s37, 0
      %p98 = por %p96, %p97
      %p99 = scmp.ne.s32.totalorder %s85, %s86
      %p100 = scmp.eq.s32.totalorder %s38, 1
      %p101 = por %p99, %p100
      %p103 = scmp.ne.s32.totalorder %s86, %s102
      %p104 = scmp.eq.s32.totalorder %s38, 0
      %p105 = por %p103, %p104
      %s106 = ssub.s32 %s40, %s47
      %p107 = scmp.eq.s32.totalorder %s106, 0
      %s109 = sadd.s32 %s108, 1
      %s110 = scalar_select %p107, %s108, %s109
      %p113 = pneg %p107
      %p114 = scmp.eq.s32.totalorder %s32, 1
      %p115 = por %p113, %p114
      %p116 = scmp.ne.s32.totalorder %s108, %s111
      %p117 = scmp.eq.s32.totalorder %s32, 0
      %p118 = por %p116, %p117
      %p119 = scmp.ne.s32.totalorder %s108, %s111
      %p120 = scmp.eq.s32.totalorder %s37, 1
      %p121 = por %p119, %p120
      %p122 = scmp.ne.s32.totalorder %s111, %s112
      %p123 = scmp.eq.s32.totalorder %s37, 0
      %p124 = por %p122, %p123
      %p125 = scmp.ne.s32.totalorder %s111, %s112
      %p126 = scmp.eq.s32.totalorder %s38, 1
      %p127 = por %p125, %p126
      %p129 = scmp.ne.s32.totalorder %s112, %s128
      %p130 = scmp.eq.s32.totalorder %s38, 0
      %p131 = por %p129, %p130
      %s133 = sadd.s32 %s132, 1
      %p136 = scmp.eq.s32.totalorder %s32, 1
      %p137 = scmp.ne.s32.totalorder %s132, %s134
      %p138 = scmp.eq.s32.totalorder %s32, 0
      %p139 = por %p137, %p138
      %p140 = scmp.ne.s32.totalorder %s132, %s134
      %p141 = scmp.eq.s32.totalorder %s37, 1
      %p142 = por %p140, %p141
      %p143 = scmp.ne.s32.totalorder %s134, %s135
      %p144 = scmp.eq.s32.totalorder %s37, 0
      %p145 = por %p143, %p144
      %p146 = scmp.ne.s32.totalorder %s134, %s135
      %p147 = scmp.eq.s32.totalorder %s38, 1
      %p148 = por %p146, %p147
      %p150 = scmp.ne.s32.totalorder %s135, %s149
      %p151 = scmp.eq.s32.totalorder %s38, 0
      %p152 = por %p150, %p151
      %s154 = sadd.s32 %s153, 1
      %p157 = scmp.eq.s32.totalorder %s32, 1
      %p158 = scmp.ne.s32.totalorder %s153, %s155
      %p159 = scmp.eq.s32.totalorder %s32, 0
      %p160 = por %p158, %p159
      %p161 = scmp.ne.s32.totalorder %s153, %s155
      %p162 = scmp.eq.s32.totalorder %s37, 1
      %p163 = por %p161, %p162
      %p164 = scmp.ne.s32.totalorder %s155, %s156
      %p165 = scmp.eq.s32.totalorder %s37, 0
      %p166 = por %p164, %p165
      %p167 = scmp.ne.s32.totalorder %s155, %s156
      %p168 = scmp.eq.s32.totalorder %s38, 1
      %p169 = por %p167, %p168
      %p171 = scmp.ne.s32.totalorder %s156, %s170
      %p172 = scmp.eq.s32.totalorder %s38, 0
      %p173 = por %p171, %p172
      %s175 = sadd.s32 %s174, 1
      %p178 = scmp.eq.s32.totalorder %s32, 1
      %p179 = scmp.ne.s32.totalorder %s174, %s176
      %p180 = scmp.eq.s32.totalorder %s32, 0
      %p181 = por %p179, %p180
      %p182 = scmp.ne.s32.totalorder %s174, %s176
      %p183 = scmp.eq.s32.totalorder %s37, 1
      %p184 = por %p182, %p183
      %p185 = scmp.ne.s32.totalorder %s176, %s177
      %p186 = scmp.eq.s32.totalorder %s37, 0
      %p187 = por %p185, %p186
      %p188 = scmp.ne.s32.totalorder %s176, %s177
      %p189 = scmp.eq.s32.totalorder %s38, 1
      %p190 = por %p188, %p189
      %p192 = scmp.ne.s32.totalorder %s177, %s191
      %p193 = scmp.eq.s32.totalorder %s38, 0
      %p194 = por %p192, %p193
      %s196 = sadd.s32 %s195, 1
      %p199 = scmp.eq.s32.totalorder %s32, 1
      %p200 = scmp.ne.s32.totalorder %s195, %s197
      %p201 = scmp.eq.s32.totalorder %s32, 0
      %p202 = por %p200, %p201
      %p203 = scmp.ne.s32.totalorder %s195, %s197
      %p204 = scmp.eq.s32.totalorder %s37, 1
      %p205 = por %p203, %p204
      %p206 = scmp.ne.s32.totalorder %s197, %s198
      %p207 = scmp.eq.s32.totalorder %s37, 0
      %p208 = por %p206, %p207
      %p209 = scmp.ne.s32.totalorder %s197, %s198
      %p210 = scmp.eq.s32.totalorder %s38, 1
      %p211 = por %p209, %p210
      %p213 = scmp.ne.s32.totalorder %s198, %s212
      %p214 = scmp.eq.s32.totalorder %s38, 0
      %p215 = por %p213, %p214
      %s217 = sadd.s32 %s216, 1
      %p220 = scmp.eq.s32.totalorder %s32, 1
      %p221 = scmp.ne.s32.totalorder %s216, %s218
      %p222 = scmp.eq.s32.totalorder %s32, 0
      %p223 = por %p221, %p222
      %p224 = scmp.ne.s32.totalorder %s216, %s218
      %p225 = scmp.eq.s32.totalorder %s37, 1
      %p226 = por %p224, %p225
      %p227 = scmp.ne.s32.totalorder %s218, %s219
      %p228 = scmp.eq.s32.totalorder %s37, 0
      %p229 = por %p227, %p228
      %p230 = scmp.ne.s32.totalorder %s218, %s219
      %p231 = scmp.eq.s32.totalorder %s38, 1
      %p232 = por %p230, %p231
      %p234 = scmp.ne.s32.totalorder %s219, %s233
      %p235 = scmp.eq.s32.totalorder %s38, 0
      %p236 = por %p234, %p235
      %s238 = sadd.s32 %s237, 1
      %p241 = scmp.eq.s32.totalorder %s32, 1
      %p242 = scmp.ne.s32.totalorder %s237, %s239
      %p243 = scmp.eq.s32.totalorder %s32, 0
      %p244 = por %p242, %p243
      %p245 = scmp.ne.s32.totalorder %s237, %s239
      %p246 = scmp.eq.s32.totalorder %s37, 1
      %p247 = por %p245, %p246
      %p248 = scmp.ne.s32.totalorder %s239, %s240
      %p249 = scmp.eq.s32.totalorder %s37, 0
      %p250 = por %p248, %p249
      %p251 = scmp.ne.s32.totalorder %s239, %s240
      %p252 = scmp.eq.s32.totalorder %s38, 1
      %p253 = por %p251, %p252
      %p255 = scmp.ne.s32.totalorder %s240, %s254
      %p256 = scmp.eq.s32.totalorder %s38, 0
      %p257 = por %p255, %p256
      %s259 = sadd.s32 %s258, 1
      %p262 = scmp.eq.s32.totalorder %s32, 1
      %p263 = scmp.ne.s32.totalorder %s258, %s260
      %p264 = scmp.eq.s32.totalorder %s32, 0
      %p265 = por %p263, %p264
      %p266 = scmp.ne.s32.totalorder %s258, %s260
      %p267 = scmp.eq.s32.totalorder %s37, 1
      %p268 = por %p266, %p267
      %p269 = scmp.ne.s32.totalorder %s260, %s261
      %p270 = scmp.eq.s32.totalorder %s37, 0
      %p271 = por %p269, %p270
      %p272 = scmp.ne.s32.totalorder %s260, %s261
      %p273 = scmp.eq.s32.totalorder %s38, 1
      %p274 = por %p272, %p273
      %p276 = scmp.ne.s32.totalorder %s261, %s275
      %p277 = scmp.eq.s32.totalorder %s38, 0
      %p278 = por %p276, %p277
      %s280 = sadd.s32 %s279, 1
      %p283 = scmp.eq.s32.totalorder %s32, 1
      %p284 = scmp.ne.s32.totalorder %s279, %s281
      %p285 = scmp.eq.s32.totalorder %s32, 0
      %p286 = por %p284, %p285
      %p287 = scmp.ne.s32.totalorder %s279, %s281
      %p288 = scmp.eq.s32.totalorder %s37, 1
      %p289 = por %p287, %p288
      %p290 = scmp.ne.s32.totalorder %s281, %s282
      %p291 = scmp.eq.s32.totalorder %s37, 0
      %p292 = por %p290, %p291
      %p293 = scmp.ne.s32.totalorder %s281, %s282
      %p294 = scmp.eq.s32.totalorder %s38, 1
      %p295 = por %p293, %p294
      %p297 = scmp.ne.s32.totalorder %s282, %s296
      %p298 = scmp.eq.s32.totalorder %s38, 0
      %p299 = por %p297, %p298
      %s301 = sadd.s32 %s300, 1
      %p304 = scmp.eq.s32.totalorder %s32, 1
      %p305 = scmp.ne.s32.totalorder %s300, %s302
      %p306 = scmp.eq.s32.totalorder %s32, 0
      %p307 = por %p305, %p306
      %p308 = scmp.ne.s32.totalorder %s300, %s302
      %p309 = scmp.eq.s32.totalorder %s37, 1
      %p310 = por %p308, %p309
      %p311 = scmp.ne.s32.totalorder %s302, %s303
      %p312 = scmp.eq.s32.totalorder %s37, 0
      %p313 = por %p311, %p312
      %p314 = scmp.ne.s32.totalorder %s302, %s303
      %p315 = scmp.eq.s32.totalorder %s38, 1
      %p316 = por %p314, %p315
      %p318 = scmp.ne.s32.totalorder %s303, %s317
      %p319 = scmp.eq.s32.totalorder %s38, 0
      %p320 = por %p318, %p319
      %s321 = ssub.s32 %s39, %s51
      %s322 = ssub.s32 %s40, %s47
      %s323 = sor.u32 %s321, %s322
      %p324 = scmp.eq.s32.totalorder %s323, 0
      %s326 = sadd.s32 %s325, 1
      %s327 = scalar_select %p324, %s325, %s326
      %p330 = pneg %p324
      %p331 = scmp.eq.s32.totalorder %s32, 1
      %p332 = por %p330, %p331
      %p333 = scmp.ne.s32.totalorder %s325, %s328
      %p334 = scmp.eq.s32.totalorder %s32, 0
      %p335 = por %p333, %p334
      %p336 = scmp.ne.s32.totalorder %s325, %s328
      %p337 = scmp.eq.s32.totalorder %s37, 1
      %p338 = por %p336, %p337
      %p339 = scmp.ne.s32.totalorder %s328, %s329
      %p340 = scmp.eq.s32.totalorder %s37, 0
      %p341 = por %p339, %p340
      %p342 = scmp.ne.s32.totalorder %s328, %s329
      %p343 = scmp.eq.s32.totalorder %s38, 1
      %p344 = por %p342, %p343
      %p346 = scmp.ne.s32.totalorder %s329, %s345
      %p347 = scmp.eq.s32.totalorder %s38, 0
      %p348 = por %p346, %p347
      %s349 = ssub.s32 %s39, %s51
      %s350 = ssub.s32 %s40, %s47
      %s351 = sor.u32 %s349, %s350
      %p352 = scmp.eq.s32.totalorder %s351, 0
      %s354 = sadd.s32 %s353, 1
      %s355 = scalar_select %p352, %s353, %s354
      %p358 = pneg %p352
      %p359 = scmp.eq.s32.totalorder %s32, 1
      %p360 = por %p358, %p359
      %p361 = scmp.ne.s32.totalorder %s353, %s356
      %p362 = scmp.eq.s32.totalorder %s32, 0
      %p363 = por %p361, %p362
      %p364 = scmp.ne.s32.totalorder %s353, %s356
      %p365 = scmp.eq.s32.totalorder %s37, 1
      %p366 = por %p364, %p365
      %p367 = scmp.ne.s32.totalorder %s356, %s357
      %p368 = scmp.eq.s32.totalorder %s37, 0
      %p369 = por %p367, %p368
      %p370 = scmp.ne.s32.totalorder %s356, %s357
      %p371 = scmp.eq.s32.totalorder %s38, 1
      %p372 = por %p370, %p371
      %p374 = scmp.ne.s32.totalorder %s357, %s373
      %p375 = scmp.eq.s32.totalorder %s38, 0
      %p376 = por %p374, %p375
      %s377 = ssub.s32 %s39, %s51
      %s378 = ssub.s32 %s40, %s47
      %s379 = sor.u32 %s377, %s378
      %p380 = scmp.eq.s32.totalorder %s379, 0
      %s382 = sadd.s32 %s381, 1
      %s383 = scalar_select %p380, %s381, %s382
      %p386 = pneg %p380
      %p387 = scmp.eq.s32.totalorder %s32, 1
      %p388 = por %p386, %p387
      %p389 = scmp.ne.s32.totalorder %s381, %s384
      %p390 = scmp.eq.s32.totalorder %s32, 0
      %p391 = por %p389, %p390
      %p392 = scmp.ne.s32.totalorder %s381, %s384
      %p393 = scmp.eq.s32.totalorder %s37, 1
      %p394 = por %p392, %p393
      %p395 = scmp.ne.s32.totalorder %s384, %s385
      %p396 = scmp.eq.s32.totalorder %s37, 0
      %p397 = por %p395, %p396
      %p398 = scmp.ne.s32.totalorder %s384, %s385
      %p399 = scmp.eq.s32.totalorder %s38, 1
      %p400 = por %p398, %p399
      %p402 = scmp.ne.s32.totalorder %s385, %s401
      %p403 = scmp.eq.s32.totalorder %s38, 0
      %p404 = por %p402, %p403
      %s405 = ssub.s32 %s39, %s51
      %s406 = ssub.s32 %s40, %s47
      %s407 = sor.u32 %s405, %s406
      %p408 = scmp.eq.s32.totalorder %s407, 0
      %s410 = sadd.s32 %s409, 1
      %s411 = scalar_select %p408, %s409, %s410
      %p414 = pneg %p408
      %p415 = scmp.eq.s32.totalorder %s32, 1
      %p416 = por %p414, %p415
      %p417 = scmp.ne.s32.totalorder %s409, %s412
      %p418 = scmp.eq.s32.totalorder %s32, 0
      %p419 = por %p417, %p418
      %p420 = scmp.ne.s32.totalorder %s409, %s412
      %p421 = scmp.eq.s32.totalorder %s37, 1
      %p422 = por %p420, %p421
      %p423 = scmp.ne.s32.totalorder %s412, %s413
      %p424 = scmp.eq.s32.totalorder %s37, 0
      %p425 = por %p423, %p424
      %p426 = scmp.ne.s32.totalorder %s412, %s413
      %p427 = scmp.eq.s32.totalorder %s38, 1
      %p428 = por %p426, %p427
      %p430 = scmp.ne.s32.totalorder %s413, %s429
      %p431 = scmp.eq.s32.totalorder %s38, 0
      %p432 = por %p430, %p431
      %s433 = ssub.s32 %s39, %s51
      %s434 = ssub.s32 %s40, %s47
      %s435 = sor.u32 %s433, %s434
      %p436 = scmp.eq.s32.totalorder %s435, 0
      %s438 = sadd.s32 %s437, 1
      %s439 = scalar_select %p436, %s437, %s438
      %p442 = pneg %p436
      %p443 = scmp.eq.s32.totalorder %s32, 1
      %p444 = por %p442, %p443
      %p445 = scmp.ne.s32.totalorder %s437, %s440
      %p446 = scmp.eq.s32.totalorder %s32, 0
      %p447 = por %p445, %p446
      %p448 = scmp.ne.s32.totalorder %s437, %s440
      %p449 = scmp.eq.s32.totalorder %s37, 1
      %p450 = por %p448, %p449
      %p451 = scmp.ne.s32.totalorder %s440, %s441
      %p452 = scmp.eq.s32.totalorder %s37, 0
      %p453 = por %p451, %p452
      %p454 = scmp.ne.s32.totalorder %s440, %s441
      %p455 = scmp.eq.s32.totalorder %s38, 1
      %p456 = por %p454, %p455
      %p458 = scmp.ne.s32.totalorder %s441, %s457
      %p459 = scmp.eq.s32.totalorder %s38, 0
      %p460 = por %p458, %p459
      %p461 = scmp.le.s32.totalorder 1, %s32
      %p462 = scmp.lt.s32.totalorder %s32, 3
      %p463 = pnand %p461, %p462
      %p464 = pneg %p463
      // Predicated region
      $region9: #{tpu_custom_call.1} parent=5 // pred_check
        _
      $region10: #{tpu_custom_call.1} parent=5 // pred_check_branch
        %466 = sbr.rel (%p463) target = $region12
      $region11: #{tpu_custom_call.1} parent=5 // pred_region
        %s467 = ssub.s32 %s32, 1
        // Predicated region
        $region13: #{tpu_custom_call.1} parent=11 // pred_check
          %p468 = pneg %p98
        $region14: #{tpu_custom_call.1} parent=11 // pred_check_branch
          %470 = sbr.rel (%p468) target = $region16
        $region15: #{tpu_custom_call.1} parent=11 // pred_region
          %p471 = scmp.lt.s32.totalorder %s42, 0
          %s472 = scalar_select %p471, %s42, 0
          %s473 = smul.addr %s472, 8
          %s474 = scalar_lea.vmem %s1, %s473
        $region16: #{tpu_custom_call.1} parent=11 // pred_fallthru
          _
        // Predicated region
        $region17: #{tpu_custom_call.1} parent=11 // pred_check
          %p475 = pneg %p124
        $region18: #{tpu_custom_call.1} parent=11 // pred_check_branch
          %477 = sbr.rel (%p475) target = $region20
        $region19: #{tpu_custom_call.1} parent=11 // pred_region
          %p478 = scmp.lt.s32.totalorder %s42, 0
          %s479 = scalar_select %p478, %s42, 0
          %s480 = smul.addr %s479, 8
          %s481 = scalar_lea.vmem %s2, %s480
        $region20: #{tpu_custom_call.1} parent=11 // pred_fallthru
          _
        // Predicated region
        $region21: #{tpu_custom_call.1} parent=11 // pred_check
          %p482 = pneg %p145
        $region22: #{tpu_custom_call.1} parent=11 // pred_check_branch
          %484 = sbr.rel (%p482) target = $region24
        $region23: #{tpu_custom_call.1} parent=11 // pred_region
          _
        $region24: #{tpu_custom_call.1} parent=11 // pred_fallthru
          _
        // Predicated region
        $region25: #{tpu_custom_call.1} parent=11 // pred_check
          %p485 = pneg %p166
        $region26: #{tpu_custom_call.1} parent=11 // pred_check_branch
          %487 = sbr.rel (%p485) target = $region28
        $region27: #{tpu_custom_call.1} parent=11 // pred_region
          _
        $region28: #{tpu_custom_call.1} parent=11 // pred_fallthru
          _
        // Predicated region
        $region29: #{tpu_custom_call.1} parent=11 // pred_check
          %p488 = pneg %p187
        $region30: #{tpu_custom_call.1} parent=11 // pred_check_branch
          %490 = sbr.rel (%p488) target = $region32
        $region31: #{tpu_custom_call.1} parent=11 // pred_region
          _
        $region32: #{tpu_custom_call.1} parent=11 // pred_fallthru
          _
        // Predicated region
        $region33: #{tpu_custom_call.1} parent=11 // pred_check
          %p491 = pneg %p208
        $region34: #{tpu_custom_call.1} parent=11 // pred_check_branch
          %493 = sbr.rel (%p491) target = $region36
        $region35: #{tpu_custom_call.1} parent=11 // pred_region
          _
        $region36: #{tpu_custom_call.1} parent=11 // pred_fallthru
          _
        // Predicated region
        $region37: #{tpu_custom_call.1} parent=11 // pred_check
          %p494 = pneg %p229
        $region38: #{tpu_custom_call.1} parent=11 // pred_check_branch
          %496 = sbr.rel (%p494) target = $region40
        $region39: #{tpu_custom_call.1} parent=11 // pred_region
          _
        $region40: #{tpu_custom_call.1} parent=11 // pred_fallthru
          _
        // Predicated region
        $region41: #{tpu_custom_call.1} parent=11 // pred_check
          %p497 = pneg %p250
        $region42: #{tpu_custom_call.1} parent=11 // pred_check_branch
          %499 = sbr.rel (%p497) target = $region44
        $region43: #{tpu_custom_call.1} parent=11 // pred_region
          _
        $region44: #{tpu_custom_call.1} parent=11 // pred_fallthru
          _
        // Predicated region
        $region45: #{tpu_custom_call.1} parent=11 // pred_check
          %p500 = pneg %p271
        $region46: #{tpu_custom_call.1} parent=11 // pred_check_branch
          %502 = sbr.rel (%p500) target = $region48
        $region47: #{tpu_custom_call.1} parent=11 // pred_region
          _
        $region48: #{tpu_custom_call.1} parent=11 // pred_fallthru
          _
        // Predicated region
        $region49: #{tpu_custom_call.1} parent=11 // pred_check
          %p503 = pneg %p292
        $region50: #{tpu_custom_call.1} parent=11 // pred_check_branch
          %505 = sbr.rel (%p503) target = $region52
        $region51: #{tpu_custom_call.1} parent=11 // pred_region
          _
        $region52: #{tpu_custom_call.1} parent=11 // pred_fallthru
          _
        // Predicated region
        $region53: #{tpu_custom_call.1} parent=11 // pred_check
          %p506 = pneg %p313
        $region54: #{tpu_custom_call.1} parent=11 // pred_check_branch
          %508 = sbr.rel (%p506) target = $region56
        $region55: #{tpu_custom_call.1} parent=11 // pred_region
          _
        $region56: #{tpu_custom_call.1} parent=11 // pred_fallthru
          _
      $region12: #{tpu_custom_call.1} parent=5 // pred_fallthru
        _
      %p509 = scmp.lt.s32.totalorder %s32, 2
      // Predicated region
      $region57: #{tpu_custom_call.1} parent=5 // pred_check
        %p510 = pneg %p509
      $region58: #{tpu_custom_call.1} parent=5 // pred_check_branch
        %512 = sbr.rel (%p510) target = $region60
      $region59: #{tpu_custom_call.1} parent=5 // pred_region
        // Predicated region
        $region61: #{tpu_custom_call.1} parent=59 // pred_check
          %p513 = pneg %p66
        $region62: #{tpu_custom_call.1} parent=59 // pred_check_branch
          %515 = sbr.rel (%p513) target = $region64
        $region63: #{tpu_custom_call.1} parent=59 // pred_region
          %p516 = scmp.lt.s32.totalorder %s39, 1
          %s517 = scalar_select %p516, %s39, 1
          %p518 = scmp.lt.s32.totalorder %s40, 0
          %s519 = scalar_select %p518, %s40, 0
          %s520 = sadd.s32 %s519, %s517
          %s521 = smul.addr %s520, 4
          %s522 = scalar_lea.vmem %s0, %s521
        $region64: #{tpu_custom_call.1} parent=59 // pred_fallthru
          _
      $region60: #{tpu_custom_call.1} parent=5 // pred_fallthru
        _
      %p523 = scmp.le.s32.totalorder 1, %s32
      %p524 = scmp.lt.s32.totalorder %s32, 3
      %p525 = pnand %p523, %p524
      %p526 = pneg %p525
      // Predicated region
      $region65: #{tpu_custom_call.1} parent=5 // pred_check
        _
      $region66: #{tpu_custom_call.1} parent=5 // pred_check_branch
        %528 = sbr.rel (%p525) target = $region68
      $region67: #{tpu_custom_call.1} parent=5 // pred_region
        %s529 = ssub.s32 %s32, 1
        %p530 = scmp.lt.s32.totalorder %s41, 1
        %s531 = scalar_select %p530, %s41, 1
        %p532 = scmp.lt.s32.totalorder %s42, 0
        %s533 = scalar_select %p532, %s42, 0
        %s534 = sadd.s32 %s533, %s531
        %s535 = smul.addr %s534, 4
        %s536 = scalar_lea.vmem %s0, %s535
        %p537 = pneg %p72
        %p538 = pneg %p69
        %p539 = scmp.lt.s32.totalorder %s42, 0
        %s540 = scalar_select %p539, %s42, 0
        %s541 = smul.addr %s540, 8
        %s542 = scalar_lea.vmem %s1, %s541
        %p543 = pneg %p98
        %p544 = pneg %p95
        %p545 = scmp.lt.s32.totalorder %s42, 0
        %s546 = scalar_select %p545, %s42, 0
        %s547 = smul.addr %s546, 8
        %s548 = scalar_lea.vmem %s2, %s547
        %p549 = pneg %p124
        %p550 = pneg %p121
        %p551 = pneg %p145
        %p552 = pneg %p142
        %p553 = pneg %p166
        %p554 = pneg %p163
        %p555 = pneg %p187
        %p556 = pneg %p184
        %p557 = pneg %p208
        %p558 = pneg %p205
        %p559 = pneg %p229
        %p560 = pneg %p226
        %p561 = pneg %p250
        %p562 = pneg %p247
        %p563 = pneg %p271
        %p564 = pneg %p268
        %p565 = pneg %p292
        %p566 = pneg %p289
        %p567 = pneg %p313
        %p568 = pneg %p310
        %p569 = pneg %p341
        %p570 = pneg %p338
        %s571 = sand.u32 %s328, 1
        %s572 = scalar_lea.sflag [#allocation3], %s571
        %s573 = sand.u32 %s328, 1
        %s574 = smul.addr %s573, 16
        %s575 = scalar_lea.vmem [#allocation2], %s574
        %p576 = pneg %p369
        %p577 = pneg %p366
        %s578 = sand.u32 %s37, 1
        %s579 = scalar_lea.sflag [#allocation5], %s578
        %s580 = sand.u32 %s356, 1
        %s581 = smul.addr %s580, 16
        %s582 = scalar_lea.vmem [#allocation4], %s581
        %p583 = pneg %p397
        %p584 = pneg %p394
        %s585 = sand.u32 %s37, 1
        %s586 = scalar_lea.sflag [#allocation5], %s585
        %s587 = sand.u32 %s384, 1
        %s588 = smul.addr %s587, 16
        %s589 = scalar_lea.vmem [#allocation6], %s588
        %p590 = pneg %p425
        %p591 = pneg %p422
        %s592 = sand.u32 %s37, 1
        %s593 = scalar_lea.sflag [#allocation8], %s592
        %s594 = sand.u32 %s412, 1
        %s595 = smul.addr %s594, 16
        %s596 = scalar_lea.vmem [#allocation7], %s595
        %p597 = pneg %p453
        %p598 = pneg %p450
        %s599 = sand.u32 %s37, 1
        %s600 = scalar_lea.sflag [#allocation8], %s599
        %s601 = sand.u32 %s440, 1
        %s602 = smul.addr %s601, 4
        %s603 = scalar_lea.vmem [#allocation9], %s602
        %p604 = scmp.lt.s32.totalorder %s41, 1
        %s605 = scalar_select %p604, %s41, 1
        %p606 = scmp.lt.s32.totalorder %s42, 0
        %s607 = scalar_select %p606, %s42, 0
        %s608 = sadd.s32 %s607, %s605
        %s609 = smul.addr %s608, 4
        %s610 = scalar_lea.vmem %s0, %s609
        %p611 = scmp.lt.s32.totalorder %s42, 0
        %s612 = scalar_select %p611, %s42, 0
        %s613 = smul.addr %s612, 8
        %s614 = scalar_lea.vmem %s1, %s613
        %p615 = scmp.lt.s32.totalorder %s42, 0
        %s616 = scalar_select %p615, %s42, 0
        %s617 = smul.addr %s616, 8
        %s618 = scalar_lea.vmem %s2, %s617
        %v620 = vld [vmem:[%s610] sm:$0xf]
        %v621 = vld [vmem:[%s3] sm:$0xf]
        %v622 = vld [vmem:[%s3 + $0x4] sm:$0xf]
        %v623 = vld [vmem:[%s3 + $0x8] sm:$0xf]
        %v624 = vld [vmem:[%s3 + $0xc] sm:$0xf]
        %v629 = vunpack.c.l.b16 %v621
        %v630 = vunpack.c.l.b16 %v622
        %v631 = vunpack.c.l.b16 %v623
        %v632 = vunpack.c.l.b16 %v624
        %v633 = vpack.c.b16 %v630, %v629
        %v634 = vpack.c.b16 %v632, %v631
        %vm637 = vcmask 261120
        %v639 = vsel %vm637, %v620, 0
        %641 = vmatprep.subr.bf16.mxu0 0
        %642 = vmatpush1.bf16.msra.mxu0 %v633
        %643 = vmatprep.subr.bf16.mxu0 0
        %644 = vmatpush1.bf16.msra.mxu0 %v634
        %645 = vmatprep.subr.bf16.mxu0 0
        %646 = vmatpush1.bf16.msra.mxu0 0
        %647 = vmatprep.subr.bf16.mxu0 0
        %648 = vmatpush1.bf16.msra.mxu0 0
        %649 = vmatprep.subr.bf16.mxu0 0
        %650 = vmatpush1.bf16.msra.mxu0 0
        %651 = vmatprep.subr.bf16.mxu0 0
        %652 = vmatpush1.bf16.msra.mxu0 0
        %653 = vmatprep.subr.bf16.mxu0 0
        %654 = vmatpush1.bf16.msra.mxu0 0
        %655 = vmatprep.subr.bf16.mxu0 0
        %656 = vmatpush1.bf16.msra.mxu0 0
        %657 = vmatprep.subr.bf16.mxu0 0
        %658 = vmatpush1.bf16.msra.mxu0 0
        %659 = vmatprep.subr.bf16.mxu0 0
        %660 = vmatpush1.bf16.msra.mxu0 0
        %661 = vmatprep.subr.bf16.mxu0 0
        %662 = vmatpush1.bf16.msra.mxu0 0
        %663 = vmatprep.subr.bf16.mxu0 0
        %664 = vmatpush1.bf16.msra.mxu0 0
        %665 = vmatprep.subr.bf16.mxu0 0
        %666 = vmatpush1.bf16.msra.mxu0 0
        %667 = vmatprep.subr.bf16.mxu0 0
        %668 = vmatpush1.bf16.msra.mxu0 0
        %669 = vmatprep.subr.bf16.mxu0 0
        %670 = vmatpush1.bf16.msra.mxu0 0
        %671 = vmatprep.subr.bf16.mxu0 0
        %672 = vmatpush1.bf16.msra.mxu0 0
        %673 = vmatprep.mubr.bf16.mxu0 0
        %674 = vmatmul.mubr.bf16.gmra.mrb[0].mxu0 %v639
        %v675 = vpop.f32.mrb[0].mxu0
        %v676 = vadd.f32 0.0, %v675
        %v677 = vpop.f32.mrb[0].mxu0
        %v678 = vpop.f32.mrb[0].mxu0
        %v679 = vpop.f32.mrb[0].mxu0
        %680 = vdwg.mxu0
        %v681 = vpack.c.bf16 %v676, %v676
        %v682 = vld [vmem:[%s4] sm:$0xf]
        %v683 = vld [vmem:[%s4 + $0x4] sm:$0xf]
        %v684 = vld [vmem:[%s4 + $0x8] sm:$0xf]
        %v685 = vld [vmem:[%s4 + $0xc] sm:$0xf]
        %v690 = vunpack.c.l.b16 %v682
        %v691 = vunpack.c.l.b16 %v683
        %v692 = vunpack.c.l.b16 %v684
        %v693 = vunpack.c.l.b16 %v685
        %v694 = vpack.c.b16 %v691, %v690
        %v695 = vpack.c.b16 %v693, %v692
        %698 = vmatprep.subr.bf16.mxu0 0
        %699 = vmatpush1.bf16.msra.mxu0 %v694
        %700 = vmatprep.subr.bf16.mxu0 0
        %701 = vmatpush1.bf16.msra.mxu0 %v695
        %702 = vmatprep.subr.bf16.mxu0 0
        %703 = vmatpush1.bf16.msra.mxu0 0
        %704 = vmatprep.subr.bf16.mxu0 0
        %705 = vmatpush1.bf16.msra.mxu0 0
        %706 = vmatprep.subr.bf16.mxu0 0
        %707 = vmatpush1.bf16.msra.mxu0 0
        %708 = vmatprep.subr.bf16.mxu0 0
        %709 = vmatpush1.bf16.msra.mxu0 0
        %710 = vmatprep.subr.bf16.mxu0 0
        %711 = vmatpush1.bf16.msra.mxu0 0
        %712 = vmatprep.subr.bf16.mxu0 0
        %713 = vmatpush1.bf16.msra.mxu0 0
        %714 = vmatprep.subr.bf16.mxu0 0
        %715 = vmatpush1.bf16.msra.mxu0 0
        %716 = vmatprep.subr.bf16.mxu0 0
        %717 = vmatpush1.bf16.msra.mxu0 0
        %718 = vmatprep.subr.bf16.mxu0 0
        %719 = vmatpush1.bf16.msra.mxu0 0
        %720 = vmatprep.subr.bf16.mxu0 0
        %721 = vmatpush1.bf16.msra.mxu0 0
        %722 = vmatprep.subr.bf16.mxu0 0
        %723 = vmatpush1.bf16.msra.mxu0 0
        %724 = vmatprep.subr.bf16.mxu0 0
        %725 = vmatpush1.bf16.msra.mxu0 0
        %726 = vmatprep.subr.bf16.mxu0 0
        %727 = vmatpush1.bf16.msra.mxu0 0
        %728 = vmatprep.subr.bf16.mxu0 0
        %729 = vmatpush1.bf16.msra.mxu0 0
        %730 = vmatprep.mubr.bf16.mxu0 0
        %731 = vmatmul.mubr.bf16.gmra.mrb[0].mxu0 %v639
        %v732 = vpop.f32.mrb[0].mxu0
        %v733 = vadd.f32 0.0, %v732
        %v734 = vpop.f32.mrb[0].mxu0
        %v735 = vpop.f32.mrb[0].mxu0
        %v736 = vpop.f32.mrb[0].mxu0
        %737 = vdwg.mxu0
        %v738 = vpack.c.bf16 %v733, %v733
        %v739 = vld [vmem:[%s5] sm:$0xf]
        %v740 = vld [vmem:[%s5 + $0x4] sm:$0xf]
        %v743 = vunpack.c.l.b16 %v739
        %v744 = vunpack.c.l.b16 %v740
        %v745 = vpack.c.b16 %v744, %v743
        %vm747 = vcmask 130048
        %v749 = vsel %vm747, %v681, 0
        %751 = vmatprep.subr.bf16.mxu0 0
        %752 = vmatpush1.bf16.msra.mxu0 %v745
        %753 = vmatprep.subr.bf16.mxu0 0
        %754 = vmatpush1.bf16.msra.mxu0 0
        %755 = vmatprep.subr.bf16.mxu0 0
        %756 = vmatpush1.bf16.msra.mxu0 0
        %757 = vmatprep.subr.bf16.mxu0 0
        %758 = vmatpush1.bf16.msra.mxu0 0
        %759 = vmatprep.subr.bf16.mxu0 0
        %760 = vmatpush1.bf16.msra.mxu0 0
        %761 = vmatprep.subr.bf16.mxu0 0
        %762 = vmatpush1.bf16.msra.mxu0 0
        %763 = vmatprep.subr.bf16.mxu0 0
        %764 = vmatpush1.bf16.msra.mxu0 0
        %765 = vmatprep.subr.bf16.mxu0 0
        %766 = vmatpush1.bf16.msra.mxu0 0
        %767 = vmatprep.subr.bf16.mxu0 0
        %768 = vmatpush1.bf16.msra.mxu0 0
        %769 = vmatprep.subr.bf16.mxu0 0
        %770 = vmatpush1.bf16.msra.mxu0 0
        %771 = vmatprep.subr.bf16.mxu0 0
        %772 = vmatpush1.bf16.msra.mxu0 0
        %773 = vmatprep.subr.bf16.mxu0 0
        %774 = vmatpush1.bf16.msra.mxu0 0
        %775 = vmatprep.subr.bf16.mxu0 0
        %776 = vmatpush1.bf16.msra.mxu0 0
        %777 = vmatprep.subr.bf16.mxu0 0
        %778 = vmatpush1.bf16.msra.mxu0 0
        %779 = vmatprep.subr.bf16.mxu0 0
        %780 = vmatpush1.bf16.msra.mxu0 0
        %781 = vmatprep.subr.bf16.mxu0 0
        %782 = vmatpush1.bf16.msra.mxu0 0
        %783 = vmatprep.mubr.bf16.mxu0 0
        %784 = vmatmul.mubr.bf16.gmra.mrb[0].mxu0 %v749
        %v785 = vpop.f32.mrb[0].mxu0
        %v786 = vadd.f32 0.0, %v785
        %v787 = vpop.f32.mrb[0].mxu0
        %v788 = vpop.f32.mrb[0].mxu0
        %v789 = vpop.f32.mrb[0].mxu0
        %790 = vdwg.mxu0
        %v791 = vld [vmem:[%s6] sm:$0xf]
        %v792 = vld [vmem:[%s6 + $0x4] sm:$0xf]
        %v795 = vunpack.c.l.b16 %v791
        %v796 = vunpack.c.l.b16 %v792
        %v797 = vpack.c.b16 %v796, %v795
        %799 = vmatprep.subr.bf16.mxu0 0
        %800 = vmatpush1.bf16.msra.mxu0 %v797
        %801 = vmatprep.subr.bf16.mxu0 0
        %802 = vmatpush1.bf16.msra.mxu0 0
        %803 = vmatprep.subr.bf16.mxu0 0
        %804 = vmatpush1.bf16.msra.mxu0 0
        %805 = vmatprep.subr.bf16.mxu0 0
        %806 = vmatpush1.bf16.msra.mxu0 0
        %807 = vmatprep.subr.bf16.mxu0 0
        %808 = vmatpush1.bf16.msra.mxu0 0
        %809 = vmatprep.subr.bf16.mxu0 0
        %810 = vmatpush1.bf16.msra.mxu0 0
        %811 = vmatprep.subr.bf16.mxu0 0
        %812 = vmatpush1.bf16.msra.mxu0 0
        %813 = vmatprep.subr.bf16.mxu0 0
        %814 = vmatpush1.bf16.msra.mxu0 0
        %815 = vmatprep.subr.bf16.mxu0 0
        %816 = vmatpush1.bf16.msra.mxu0 0
        %817 = vmatprep.subr.bf16.mxu0 0
        %818 = vmatpush1.bf16.msra.mxu0 0
        %819 = vmatprep.subr.bf16.mxu0 0
        %820 = vmatpush1.bf16.msra.mxu0 0
        %821 = vmatprep.subr.bf16.mxu0 0
        %822 = vmatpush1.bf16.msra.mxu0 0
        %823 = vmatprep.subr.bf16.mxu0 0
        %824 = vmatpush1.bf16.msra.mxu0 0
        %825 = vmatprep.subr.bf16.mxu0 0
        %826 = vmatpush1.bf16.msra.mxu0 0
        %827 = vmatprep.subr.bf16.mxu0 0
        %828 = vmatpush1.bf16.msra.mxu0 0
        %829 = vmatprep.subr.bf16.mxu0 0
        %830 = vmatpush1.bf16.msra.mxu0 0
        %831 = vmatprep.mubr.bf16.mxu0 0
        %832 = vmatmul.mubr.bf16.gmra.mrb[0].mxu0 %v749
        %v833 = vpop.f32.mrb[0].mxu0
        %v834 = vadd.f32 0.0, %v833
        %v835 = vpop.f32.mrb[0].mxu0
        %v836 = vpop.f32.mrb[0].mxu0
        %v837 = vpop.f32.mrb[0].mxu0
        %838 = vdwg.mxu0
        %v839 = vld [vmem:[%s7] sm:$0xf]
        %v840 = vld [vmem:[%s7 + $0x4] sm:$0xf]
        %v843 = vunpack.c.l.b16 %v839
        %v844 = vunpack.c.l.b16 %v840
        %v845 = vpack.c.b16 %v844, %v843
        %v848 = vsel %vm747, %v738, 0
        %850 = vmatprep.subr.bf16.mxu0 0
        %851 = vmatpush1.bf16.msra.mxu0 %v845
        %852 = vmatprep.subr.bf16.mxu0 0
        %853 = vmatpush1.bf16.msra.mxu0 0
        %854 = vmatprep.subr.bf16.mxu0 0
        %855 = vmatpush1.bf16.msra.mxu0 0
        %856 = vmatprep.subr.bf16.mxu0 0
        %857 = vmatpush1.bf16.msra.mxu0 0
        %858 = vmatprep.subr.bf16.mxu0 0
        %859 = vmatpush1.bf16.msra.mxu0 0
        %860 = vmatprep.subr.bf16.mxu0 0
        %861 = vmatpush1.bf16.msra.mxu0 0
        %862 = vmatprep.subr.bf16.mxu0 0
        %863 = vmatpush1.bf16.msra.mxu0 0
        %864 = vmatprep.subr.bf16.mxu0 0
        %865 = vmatpush1.bf16.msra.mxu0 0
        %866 = vmatprep.subr.bf16.mxu0 0
        %867 = vmatpush1.bf16.msra.mxu0 0
        %868 = vmatprep.subr.bf16.mxu0 0
        %869 = vmatpush1.bf16.msra.mxu0 0
        %870 = vmatprep.subr.bf16.mxu0 0
        %871 = vmatpush1.bf16.msra.mxu0 0
        %872 = vmatprep.subr.bf16.mxu0 0
        %873 = vmatpush1.bf16.msra.mxu0 0
        %874 = vmatprep.subr.bf16.mxu0 0
        %875 = vmatpush1.bf16.msra.mxu0 0
        %876 = vmatprep.subr.bf16.mxu0 0
        %877 = vmatpush1.bf16.msra.mxu0 0
        %878 = vmatprep.subr.bf16.mxu0 0
        %879 = vmatpush1.bf16.msra.mxu0 0
        %880 = vmatprep.subr.bf16.mxu0 0
        %881 = vmatpush1.bf16.msra.mxu0 0
        %882 = vmatprep.mubr.bf16.mxu0 0
        %883 = vmatmul.mubr.bf16.gmra.mrb[0].mxu0 %v848
        %v884 = vpop.f32.mrb[0].mxu0
        %v885 = vadd.f32 0.0, %v884
        %v886 = vpop.f32.mrb[0].mxu0
        %v887 = vpop.f32.mrb[0].mxu0
        %v888 = vpop.f32.mrb[0].mxu0
        %889 = vdwg.mxu0
        %v890 = vld [vmem:[%s614] sm:$0xff]
        %v891 = vld [vmem:[%s618] sm:$0xff]
        %v892 = vpack.c.bf16 %v786, %v786
        %v893 = vld [vmem:[%s8] sm:$0xf]
        %v894 = vld [vmem:[%s8 + $0x4] sm:$0xf]
        %v895 = vld [vmem:[%s8 + $0x8] sm:$0xf]
        %v896 = vld [vmem:[%s8 + $0xc] sm:$0xf]
        %v901 = vunpack.c.l.b16 %v893
        %v902 = vunpack.c.l.b16 %v894
        %v903 = vunpack.c.l.b16 %v895
        %v904 = vunpack.c.l.b16 %v896
        %v905 = vpack.c.b16 %v902, %v901
        %v906 = vpack.c.b16 %v904, %v903
        %v910 = vsel %vm637, %v892, 0
        %912 = vmatprep.subr.bf16.mxu0 0
        %913 = vmatpush1.bf16.msra.mxu0 %v905
        %914 = vmatprep.subr.bf16.mxu0 0
        %915 = vmatpush1.bf16.msra.mxu0 %v906
        %916 = vmatprep.subr.bf16.mxu0 0
        %917 = vmatpush1.bf16.msra.mxu0 0
        %918 = vmatprep.subr.bf16.mxu0 0
        %919 = vmatpush1.bf16.msra.mxu0 0
        %920 = vmatprep.subr.bf16.mxu0 0
        %921 = vmatpush1.bf16.msra.mxu0 0
        %922 = vmatprep.subr.bf16.mxu0 0
        %923 = vmatpush1.bf16.msra.mxu0 0
        %924 = vmatprep.subr.bf16.mxu0 0
        %925 = vmatpush1.bf16.msra.mxu0 0
        %926 = vmatprep.subr.bf16.mxu0 0
        %927 = vmatpush1.bf16.msra.mxu0 0
        %928 = vmatprep.subr.bf16.mxu0 0
        %929 = vmatpush1.bf16.msra.mxu0 0
        %930 = vmatprep.subr.bf16.mxu0 0
        %931 = vmatpush1.bf16.msra.mxu0 0
        %932 = vmatprep.subr.bf16.mxu0 0
        %933 = vmatpush1.bf16.msra.mxu0 0
        %934 = vmatprep.subr.bf16.mxu0 0
        %935 = vmatpush1.bf16.msra.mxu0 0
        %936 = vmatprep.subr.bf16.mxu0 0
        %937 = vmatpush1.bf16.msra.mxu0 0
        %938 = vmatprep.subr.bf16.mxu0 0
        %939 = vmatpush1.bf16.msra.mxu0 0
        %940 = vmatprep.subr.bf16.mxu0 0
        %941 = vmatpush1.bf16.msra.mxu0 0
        %942 = vmatprep.subr.bf16.mxu0 0
        %943 = vmatpush1.bf16.msra.mxu0 0
        %944 = vmatprep.mubr.bf16.mxu0 0
        %945 = vmatmul.mubr.bf16.gmra.mrb[0].mxu0 %v910
        %v946 = vpop.f32.mrb[0].mxu0
        %v947 = vadd.f32 0.0, %v946
        %v948 = vpop.f32.mrb[0].mxu0
        %v949 = vpop.f32.mrb[0].mxu0
        %v950 = vpop.f32.mrb[0].mxu0
        %951 = vdwg.mxu0
        %v952 = vmul.f32 %v947, %v890
        %v953 = vld [vmem:[%s9] sm:$0xf]
        %v954 = vld [vmem:[%s9 + $0x4] sm:$0xf]
        %v955 = vld [vmem:[%s9 + $0x8] sm:$0xf]
        %v956 = vld [vmem:[%s9 + $0xc] sm:$0xf]
        %v961 = vunpack.c.l.b16 %v953
        %v962 = vunpack.c.l.b16 %v954
        %v963 = vunpack.c.l.b16 %v955
        %v964 = vunpack.c.l.b16 %v956
        %v965 = vpack.c.b16 %v962, %v961
        %v966 = vpack.c.b16 %v964, %v963
        %969 = vmatprep.subr.bf16.mxu0 0
        %970 = vmatpush1.bf16.msra.mxu0 %v965
        %971 = vmatprep.subr.bf16.mxu0 0
        %972 = vmatpush1.bf16.msra.mxu0 %v966
        %973 = vmatprep.subr.bf16.mxu0 0
        %974 = vmatpush1.bf16.msra.mxu0 0
        %975 = vmatprep.subr.bf16.mxu0 0
        %976 = vmatpush1.bf16.msra.mxu0 0
        %977 = vmatprep.subr.bf16.mxu0 0
        %978 = vmatpush1.bf16.msra.mxu0 0
        %979 = vmatprep.subr.bf16.mxu0 0
        %980 = vmatpush1.bf16.msra.mxu0 0
        %981 = vmatprep.subr.bf16.mxu0 0
        %982 = vmatpush1.bf16.msra.mxu0 0
        %983 = vmatprep.subr.bf16.mxu0 0
        %984 = vmatpush1.bf16.msra.mxu0 0
        %985 = vmatprep.subr.bf16.mxu0 0
        %986 = vmatpush1.bf16.msra.mxu0 0
        %987 = vmatprep.subr.bf16.mxu0 0
        %988 = vmatpush1.bf16.msra.mxu0 0
        %989 = vmatprep.subr.bf16.mxu0 0
        %990 = vmatpush1.bf16.msra.mxu0 0
        %991 = vmatprep.subr.bf16.mxu0 0
        %992 = vmatpush1.bf16.msra.mxu0 0
        %993 = vmatprep.subr.bf16.mxu0 0
        %994 = vmatpush1.bf16.msra.mxu0 0
        %995 = vmatprep.subr.bf16.mxu0 0
        %996 = vmatpush1.bf16.msra.mxu0 0
        %997 = vmatprep.subr.bf16.mxu0 0
        %998 = vmatpush1.bf16.msra.mxu0 0
        %999 = vmatprep.subr.bf16.mxu0 0
        %1000 = vmatpush1.bf16.msra.mxu0 0
        %1001 = vmatprep.mubr.bf16.mxu0 0
        %1002 = vmatmul.mubr.bf16.gmra.mrb[0].mxu0 %v910
        %v1003 = vpop.f32.mrb[0].mxu0
        %v1004 = vadd.f32 0.0, %v1003
        %v1005 = vpop.f32.mrb[0].mxu0
        %v1006 = vpop.f32.mrb[0].mxu0
        %v1007 = vpop.f32.mrb[0].mxu0
        %1008 = vdwg.mxu0
        %v1009 = vmul.f32 %v1004, %v891
        %v1010 = vadd.f32 %v952, %v1009
        %v1011 = vpack.c.bf16 %v1010, %v1010
        %vm1012 = vcmask 60416
        %1013 = vst.msk [vmem:[%s603] sm:$0xf] %vm1012, %v1011
        %v1014 = vld [vmem:[%s10] sm:$0xf]
        %v1015 = vld [vmem:[%s10 + $0x4] sm:$0xf]
        %v1018 = vunpack.c.l.b16 %v1014
        %v1019 = vunpack.c.l.b16 %v1015
        %v1020 = vpack.c.b16 %v1019, %v1018
        %1022 = vmatprep.subr.bf16.mxu0 0
        %1023 = vmatpush1.bf16.msra.mxu0 %v1020
        %1024 = vmatprep.subr.bf16.mxu0 0
        %1025 = vmatpush1.bf16.msra.mxu0 0
        %1026 = vmatprep.subr.bf16.mxu0 0
        %1027 = vmatpush1.bf16.msra.mxu0 0
        %1028 = vmatprep.subr.bf16.mxu0 0
        %1029 = vmatpush1.bf16.msra.mxu0 0
        %1030 = vmatprep.subr.bf16.mxu0 0
        %1031 = vmatpush1.bf16.msra.mxu0 0
        %1032 = vmatprep.subr.bf16.mxu0 0
        %1033 = vmatpush1.bf16.msra.mxu0 0
        %1034 = vmatprep.subr.bf16.mxu0 0
        %1035 = vmatpush1.bf16.msra.mxu0 0
        %1036 = vmatprep.subr.bf16.mxu0 0
        %1037 = vmatpush1.bf16.msra.mxu0 0
        %1038 = vmatprep.subr.bf16.mxu0 0
        %1039 = vmatpush1.bf16.msra.mxu0 0
        %1040 = vmatprep.subr.bf16.mxu0 0
        %1041 = vmatpush1.bf16.msra.mxu0 0
        %1042 = vmatprep.subr.bf16.mxu0 0
        %1043 = vmatpush1.bf16.msra.mxu0 0
        %1044 = vmatprep.subr.bf16.mxu0 0
        %1045 = vmatpush1.bf16.msra.mxu0 0
        %1046 = vmatprep.subr.bf16.mxu0 0
        %1047 = vmatpush1.bf16.msra.mxu0 0
        %1048 = vmatprep.subr.bf16.mxu0 0
        %1049 = vmatpush1.bf16.msra.mxu0 0
        %1050 = vmatprep.subr.bf16.mxu0 0
        %1051 = vmatpush1.bf16.msra.mxu0 0
        %1052 = vmatprep.subr.bf16.mxu0 0
        %1053 = vmatpush1.bf16.msra.mxu0 0
        %1054 = vmatprep.mubr.bf16.mxu0 0
        %1055 = vmatmul.mubr.bf16.gmra.mrb[0].mxu0 %v848
        %v1056 = vpop.f32.mrb[0].mxu0
        %v1057 = vadd.f32 0.0, %v1056
        %v1058 = vpop.f32.mrb[0].mxu0
        %v1059 = vpop.f32.mrb[0].mxu0
        %v1060 = vpop.f32.mrb[0].mxu0
        %1061 = vdwg.mxu0
        %v1062 = vld [vmem:[%s11] sm:$0xf]
        %v1063 = vld [vmem:[%s11 + $0x4] sm:$0xf]
        %v1066 = vunpack.c.l.b16 %v1062
        %v1067 = vunpack.c.l.b16 %v1063
        %v1068 = vpack.c.b16 %v1067, %v1066
        %1070 = vmatprep.subr.bf16.mxu0 0
        %1071 = vmatpush1.bf16.msra.mxu0 %v1068
        %1072 = vmatprep.subr.bf16.mxu0 0
        %1073 = vmatpush1.bf16.msra.mxu0 0
        %1074 = vmatprep.subr.bf16.mxu0 0
        %1075 = vmatpush1.bf16.msra.mxu0 0
        %1076 = vmatprep.subr.bf16.mxu0 0
        %1077 = vmatpush1.bf16.msra.mxu0 0
        %1078 = vmatprep.subr.bf16.mxu0 0
        %1079 = vmatpush1.bf16.msra.mxu0 0
        %1080 = vmatprep.subr.bf16.mxu0 0
        %1081 = vmatpush1.bf16.msra.mxu0 0
        %1082 = vmatprep.subr.bf16.mxu0 0
        %1083 = vmatpush1.bf16.msra.mxu0 0
        %1084 = vmatprep.subr.bf16.mxu0 0
        %1085 = vmatpush1.bf16.msra.mxu0 0
        %1086 = vmatprep.subr.bf16.mxu0 0
        %1087 = vmatpush1.bf16.msra.mxu0 0
        %1088 = vmatprep.subr.bf16.mxu0 0
        %1089 = vmatpush1.bf16.msra.mxu0 0
        %1090 = vmatprep.subr.bf16.mxu0 0
        %1091 = vmatpush1.bf16.msra.mxu0 0
        %1092 = vmatprep.subr.bf16.mxu0 0
        %1093 = vmatpush1.bf16.msra.mxu0 0
        %1094 = vmatprep.subr.bf16.mxu0 0
        %1095 = vmatpush1.bf16.msra.mxu0 0
        %1096 = vmatprep.subr.bf16.mxu0 0
        %1097 = vmatpush1.bf16.msra.mxu0 0
        %1098 = vmatprep.subr.bf16.mxu0 0
        %1099 = vmatpush1.bf16.msra.mxu0 0
        %1100 = vmatprep.subr.bf16.mxu0 0
        %1101 = vmatpush1.bf16.msra.mxu0 0
        %1102 = vmatprep.mubr.bf16.mxu0 0
        %1103 = vmatmul.mubr.bf16.gmra.mrb[0].mxu0 %v848
        %v1104 = vpop.f32.mrb[0].mxu0
        %v1105 = vadd.f32 0.0, %v1104
        %v1106 = vpop.f32.mrb[0].mxu0
        %v1107 = vpop.f32.mrb[0].mxu0
        %v1108 = vpop.f32.mrb[0].mxu0
        %1109 = vdwg.mxu0
        %v1110 = vpack.c.bf16 %v885, %v885
        %1111 = vst.msk [vmem:[%s575] sm:$0xf] %vm1012, %v1110
        %1112 = vst.msk [vmem:[%s582] sm:$0xf] %vm1012, %v892
        %v1113 = vpack.c.bf16 %v834, %v834
        %1114 = vst.msk [vmem:[%s589] sm:$0xf] %vm1012, %v1113
        %v1115 = vmul.f32 %v1057, %v890
        %v1116 = vmul.f32 %v1105, %v891
        %v1117 = vadd.f32 %v1115, %v1116
        %v1118 = vpack.c.bf16 %v1117, %v1117
        %1119 = vst.msk [vmem:[%s596] sm:$0xf] %vm1012, %v1118
        %v1121 = vunpack.c.l.b16 %v1110
        %v1122 = vpack.c.b16 %v1121, %v1121
        %1123 = vrot.lane.b32.xlu0 %v1122, 120
        %v1124 = vpop.permute.xlu0 %1123
        %s1126 = scalar_lea.vmem %s575, 4 [#allocation2]
        %1127 = vst.msk [vmem:[%s1126] sm:$0xf] %vm1012, %v1124
        %v1129 = vunpack.c.l.b16 %v892
        %v1130 = vpack.c.b16 %v1129, %v1129
        %1131 = vrot.lane.b32.xlu0 %v1130, 120
        %v1132 = vpop.permute.xlu0 %1131
        %s1134 = scalar_lea.vmem %s582, 4 [#allocation4]
        %1135 = vst.msk [vmem:[%s1134] sm:$0xf] %vm1012, %v1132
        %v1137 = vunpack.c.l.b16 %v1113
        %v1138 = vpack.c.b16 %v1137, %v1137
        %1139 = vrot.lane.b32.xlu0 %v1138, 120
        %v1140 = vpop.permute.xlu0 %1139
        %s1142 = scalar_lea.vmem %s589, 4 [#allocation6]
        %1143 = vst.msk [vmem:[%s1142] sm:$0xf] %vm1012, %v1140
        %1145 = vrot.lane.b32.xlu0 %v890, 8
        %v1146 = vpop.permute.xlu0 %1145
        %v1148 = vmul.f32 %v1057, %v1146
        %1150 = vrot.lane.b32.xlu0 %v891, 8
        %v1151 = vpop.permute.xlu0 %1150
        %v1153 = vmul.f32 %v1105, %v1151
        %v1154 = vadd.f32 %v1148, %v1153
        %v1155 = vpack.c.bf16 %v1154, %v1154
        %v1157 = vunpack.c.l.b16 %v1155
        %v1158 = vpack.c.b16 %v1157, %v1157
        %1159 = vrot.lane.b32.xlu0 %v1158, 120
        %v1160 = vpop.permute.xlu0 %1159
        %s1162 = scalar_lea.vmem %s596, 4 [#allocation7]
        %1163 = vst.msk [vmem:[%s1162] sm:$0xf] %vm1012, %v1160
        %1164 = vrot.lane.b32.xlu0 %v1122, 112
        %v1165 = vpop.permute.xlu0 %1164
        %s1167 = scalar_lea.vmem %s575, 8 [#allocation2]
        %1168 = vst.msk [vmem:[%s1167] sm:$0xf] %vm1012, %v1165
        %1169 = vrot.lane.b32.xlu0 %v1130, 112
        %v1170 = vpop.permute.xlu0 %1169
        %s1172 = scalar_lea.vmem %s582, 8 [#allocation4]
        %1173 = vst.msk [vmem:[%s1172] sm:$0xf] %vm1012, %v1170
        %1174 = vrot.lane.b32.xlu0 %v1138, 112
        %v1175 = vpop.permute.xlu0 %1174
        %s1177 = scalar_lea.vmem %s589, 8 [#allocation6]
        %1178 = vst.msk [vmem:[%s1177] sm:$0xf] %vm1012, %v1175
        %1179 = vrot.lane.b32.xlu0 %v890, 16
        %v1180 = vpop.permute.xlu0 %1179
        %v1182 = vmul.f32 %v1057, %v1180
        %1183 = vrot.lane.b32.xlu0 %v891, 16
        %v1184 = vpop.permute.xlu0 %1183
        %v1186 = vmul.f32 %v1105, %v1184
        %v1187 = vadd.f32 %v1182, %v1186
        %v1188 = vpack.c.bf16 %v1187, %v1187
        %v1190 = vunpack.c.l.b16 %v1188
        %v1191 = vpack.c.b16 %v1190, %v1190
        %1192 = vrot.lane.b32.xlu0 %v1191, 112
        %v1193 = vpop.permute.xlu0 %1192
        %s1195 = scalar_lea.vmem %s596, 8 [#allocation7]
        %1196 = vst.msk [vmem:[%s1195] sm:$0xf] %vm1012, %v1193
        %1197 = vrot.lane.b32.xlu0 %v1122, 104
        %v1198 = vpop.permute.xlu0 %1197
        %s1200 = scalar_lea.vmem %s575, 12 [#allocation2]
        %1201 = vst.msk [vmem:[%s1200] sm:$0xf] %vm1012, %v1198
        %1202 = vrot.lane.b32.xlu0 %v1130, 104
        %v1203 = vpop.permute.xlu0 %1202
        %s1205 = scalar_lea.vmem %s582, 12 [#allocation4]
        %1206 = vst.msk [vmem:[%s1205] sm:$0xf] %vm1012, %v1203
        %1207 = vrot.lane.b32.xlu0 %v1138, 104
        %v1208 = vpop.permute.xlu0 %1207
        %s1210 = scalar_lea.vmem %s589, 12 [#allocation6]
        %1211 = vst.msk [vmem:[%s1210] sm:$0xf] %vm1012, %v1208
        %1212 = vrot.lane.b32.xlu0 %v890, 24
        %v1213 = vpop.permute.xlu0 %1212
        %v1215 = vmul.f32 %v1057, %v1213
        %1216 = vrot.lane.b32.xlu0 %v891, 24
        %v1217 = vpop.permute.xlu0 %1216
        %v1219 = vmul.f32 %v1105, %v1217
        %v1220 = vadd.f32 %v1215, %v1219
        %v1221 = vpack.c.bf16 %v1220, %v1220
        %v1223 = vunpack.c.l.b16 %v1221
        %v1224 = vpack.c.b16 %v1223, %v1223
        %1225 = vrot.lane.b32.xlu0 %v1224, 104
        %v1226 = vpop.permute.xlu0 %1225
        %s1228 = scalar_lea.vmem %s596, 12 [#allocation7]
        %1229 = vst.msk [vmem:[%s1228] sm:$0xf] %vm1012, %v1226
        %s1230 = sand.u32 %s328, 1
        %s1231 = scalar_lea.sflag [#allocation3], %s1230
        %s1232 = sand.u32 %s328, 1
        %s1233 = smul.addr %s1232, 16
        %s1234 = scalar_lea.vmem [#allocation2], %s1233
        %s1235 = sand.u32 %s37, 1
        %s1236 = scalar_lea.sflag [#allocation5], %s1235
        %s1237 = sand.u32 %s356, 1
        %s1238 = smul.addr %s1237, 16
        %s1239 = scalar_lea.vmem [#allocation4], %s1238
        %s1240 = sand.u32 %s37, 1
        %s1241 = scalar_lea.sflag [#allocation5], %s1240
        %s1242 = sand.u32 %s384, 1
        %s1243 = smul.addr %s1242, 16
        %s1244 = scalar_lea.vmem [#allocation6], %s1243
        %s1245 = sand.u32 %s37, 1
        %s1246 = scalar_lea.sflag [#allocation8], %s1245
        %s1247 = sand.u32 %s412, 1
        %s1248 = smul.addr %s1247, 16
        %s1249 = scalar_lea.vmem [#allocation7], %s1248
        %s1250 = sand.u32 %s37, 1
        %s1251 = scalar_lea.sflag [#allocation8], %s1250
        %s1252 = sand.u32 %s440, 1
        %s1253 = smul.addr %s1252, 4
        %s1254 = scalar_lea.vmem [#allocation9], %s1253
        // Predicated region
        $region69: #{tpu_custom_call.1} parent=67 // pred_check
          %p1255 = pneg %p338
        $region70: #{tpu_custom_call.1} parent=67 // pred_check_branch
          %1257 = sbr.rel (%p1255) target = $region72
        $region71: #{tpu_custom_call.1} parent=67 // pred_region
          %s1259 = ssub.s32 256, 256
          %1260 = vsyncadd %s1231, %s1259
          %s1261 = smul.addr %s41, 4
          %s1262 = sadd.s32 %s42, %s1261
          %s1263 = smul.addr %s1262, 64
          %s1264 = scalar_lea.hbm %s12, %s1263
          %s1265 = sshll.u32 %s1234, 4
          %s1266 = int_to_ptr.vmem [resolvable:$true] %s1265
          %1271 = dma.vmem_to_hbm [thread:$0]  %s1266, 256, %s1264, %s1231, 64, 64, 4
        $region72: #{tpu_custom_call.1} parent=67 // pred_fallthru
          _
        // Predicated region
        $region73: #{tpu_custom_call.1} parent=67 // pred_check
          %p1272 = pneg %p366
        $region74: #{tpu_custom_call.1} parent=67 // pred_check_branch
          %1274 = sbr.rel (%p1272) target = $region76
        $region75: #{tpu_custom_call.1} parent=67 // pred_region
          %s1276 = ssub.s32 256, 256
          %1277 = vsyncadd %s1236, %s1276
          %s1278 = smul.addr %s41, 4
          %s1279 = sadd.s32 %s42, %s1278
          %s1280 = smul.addr %s1279, 64
          %s1281 = scalar_lea.hbm %s13, %s1280
          %s1282 = sshll.u32 %s1239, 4
          %s1283 = int_to_ptr.vmem [resolvable:$true] %s1282
          %1288 = dma.vmem_to_hbm [thread:$0]  %s1283, 256, %s1281, %s1236, 64, 64, 4
        $region76: #{tpu_custom_call.1} parent=67 // pred_fallthru
          _
        // Predicated region
        $region77: #{tpu_custom_call.1} parent=67 // pred_check
          %p1289 = pneg %p394
        $region78: #{tpu_custom_call.1} parent=67 // pred_check_branch
          %1291 = sbr.rel (%p1289) target = $region80
        $region79: #{tpu_custom_call.1} parent=67 // pred_region
          %s1293 = ssub.s32 256, 256
          %1294 = vsyncadd %s1241, %s1293
          %s1295 = smul.addr %s41, 4
          %s1296 = sadd.s32 %s42, %s1295
          %s1297 = smul.addr %s1296, 64
          %s1298 = scalar_lea.hbm %s14, %s1297
          %s1299 = sshll.u32 %s1244, 4
          %s1300 = int_to_ptr.vmem [resolvable:$true] %s1299
          %1305 = dma.vmem_to_hbm [thread:$0]  %s1300, 256, %s1298, %s1241, 64, 64, 4
        $region80: #{tpu_custom_call.1} parent=67 // pred_fallthru
          _
        // Predicated region
        $region81: #{tpu_custom_call.1} parent=67 // pred_check
          %p1306 = pneg %p422
        $region82: #{tpu_custom_call.1} parent=67 // pred_check_branch
          %1308 = sbr.rel (%p1306) target = $region84
        $region83: #{tpu_custom_call.1} parent=67 // pred_region
          %s1310 = ssub.s32 256, 256
          %1311 = vsyncadd %s1246, %s1310
          %s1312 = smul.addr %s41, 4
          %s1313 = sadd.s32 %s42, %s1312
          %s1314 = smul.addr %s1313, 64
          %s1315 = scalar_lea.hbm %s15, %s1314
          %s1316 = sshll.u32 %s1249, 4
          %s1317 = int_to_ptr.vmem [resolvable:$true] %s1316
          %1322 = dma.vmem_to_hbm [thread:$0]  %s1317, 256, %s1315, %s1246, 64, 64, 4
        $region84: #{tpu_custom_call.1} parent=67 // pred_fallthru
          _
        // Predicated region
        $region85: #{tpu_custom_call.1} parent=67 // pred_check
          %p1323 = pneg %p450
        $region86: #{tpu_custom_call.1} parent=67 // pred_check_branch
          %1325 = sbr.rel (%p1323) target = $region88
        $region87: #{tpu_custom_call.1} parent=67 // pred_region
          %s1327 = ssub.s32 64, 64
          %1328 = vsyncadd %s1251, %s1327
          %s1329 = sadd.s32 %s42, %s41
          %s1330 = smul.addr %s1329, 64
          %s1331 = scalar_lea.hbm %s16, %s1330
          %s1333 = sshll.u32 %s1254, 4
          %s1334 = int_to_ptr.vmem [resolvable:$true] %s1333
          %1336 = dma.vmem_to_hbm [thread:$0]  %s1334, 64, %s1331, %s1251
        $region88: #{tpu_custom_call.1} parent=67 // pred_fallthru
          _
      $region68: #{tpu_custom_call.1} parent=5 // pred_fallthru
        _
      %p1337 = scmp.le.s32.totalorder 2, %s32
      // Predicated region
      $region89: #{tpu_custom_call.1} parent=5 // pred_check
        %p1338 = pneg %p1337
      $region90: #{tpu_custom_call.1} parent=5 // pred_check_branch
        %1340 = sbr.rel (%p1338) target = $region92
      $region91: #{tpu_custom_call.1} parent=5 // pred_region
        %s1341 = ssub.s32 %s32, 2
        // Predicated region
        $region93: #{tpu_custom_call.1} parent=91 // pred_check
          %p1342 = pneg %p344
        $region94: #{tpu_custom_call.1} parent=91 // pred_check_branch
          %1344 = sbr.rel (%p1342) target = $region96
        $region95: #{tpu_custom_call.1} parent=91 // pred_region
          %s1345 = sand.u32 %s329, 1
          %s1346 = scalar_lea.sflag [#allocation3], %s1345
          %s1347 = sand.u32 %s329, 1
          %s1348 = smul.addr %s1347, 16
          %s1349 = scalar_lea.vmem [#allocation2], %s1348
          %1350 = dma.done %s1346, 256
        $region96: #{tpu_custom_call.1} parent=91 // pred_fallthru
          _
        // Predicated region
        $region97: #{tpu_custom_call.1} parent=91 // pred_check
          %p1351 = pneg %p372
        $region98: #{tpu_custom_call.1} parent=91 // pred_check_branch
          %1353 = sbr.rel (%p1351) target = $region100
        $region99: #{tpu_custom_call.1} parent=91 // pred_region
          %s1354 = sand.u32 %s38, 1
          %s1355 = scalar_lea.sflag [#allocation5], %s1354
          %s1356 = sand.u32 %s357, 1
          %s1357 = smul.addr %s1356, 16
          %s1358 = scalar_lea.vmem [#allocation4], %s1357
          %1359 = dma.done %s1355, 256
        $region100: #{tpu_custom_call.1} parent=91 // pred_fallthru
          _
        // Predicated region
        $region101: #{tpu_custom_call.1} parent=91 // pred_check
          %p1360 = pneg %p400
        $region102: #{tpu_custom_call.1} parent=91 // pred_check_branch
          %1362 = sbr.rel (%p1360) target = $region104
        $region103: #{tpu_custom_call.1} parent=91 // pred_region
          %s1363 = sand.u32 %s38, 1
          %s1364 = scalar_lea.sflag [#allocation5], %s1363
          %s1365 = sand.u32 %s385, 1
          %s1366 = smul.addr %s1365, 16
          %s1367 = scalar_lea.vmem [#allocation6], %s1366
          %1368 = dma.done %s1364, 256
        $region104: #{tpu_custom_call.1} parent=91 // pred_fallthru
          _
        // Predicated region
        $region105: #{tpu_custom_call.1} parent=91 // pred_check
          %p1369 = pneg %p428
        $region106: #{tpu_custom_call.1} parent=91 // pred_check_branch
          %1371 = sbr.rel (%p1369) target = $region108
        $region107: #{tpu_custom_call.1} parent=91 // pred_region
          %s1372 = sand.u32 %s38, 1
          %s1373 = scalar_lea.sflag [#allocation8], %s1372
          %s1374 = sand.u32 %s413, 1
          %s1375 = smul.addr %s1374, 16
          %s1376 = scalar_lea.vmem [#allocation7], %s1375
          %1377 = dma.done %s1373, 256
        $region108: #{tpu_custom_call.1} parent=91 // pred_fallthru
          _
        // Predicated region
        $region109: #{tpu_custom_call.1} parent=91 // pred_check
          %p1378 = pneg %p456
        $region110: #{tpu_custom_call.1} parent=91 // pred_check_branch
          %1380 = sbr.rel (%p1378) target = $region112
        $region111: #{tpu_custom_call.1} parent=91 // pred_region
          %s1381 = sand.u32 %s38, 1
          %s1382 = scalar_lea.sflag [#allocation8], %s1381
          %s1383 = sand.u32 %s441, 1
          %s1384 = smul.addr %s1383, 4
          %s1385 = scalar_lea.vmem [#allocation9], %s1384
          %1386 = dma.done %s1382, 64
        $region112: #{tpu_custom_call.1} parent=91 // pred_fallthru
          _
      $region92: #{tpu_custom_call.1} parent=5 // pred_fallthru
        _
    $region6: #{tpu_custom_call.1} parent=1 // loop_footer
      %s36 = sadd.s32 1, %s32
    $region7: #{tpu_custom_call.1} parent=1 // loop_footer_branch
      %31 = sbr.rel target = $region3
    $region8: #{tpu_custom_call.1} parent=1 // loop_exit
      _
    %1387 = vsyncpa [#allocation3], 1
    %s1388 = scalar_lea.sflag [#allocation3], 1
    %1389 = vsyncpa %s1388, 1
    %1390 = vsyncpa [#allocation5], 1
    %s1391 = scalar_lea.sflag [#allocation5], 1
    %1392 = vsyncpa %s1391, 1
    %1393 = vsyncpa [#allocation8], 1
    %s1394 = scalar_lea.sflag [#allocation8], 1
    %1395 = vsyncpa %s1394, 1

</llo_original>
